<compile_context>
chip_gen: v7x
topology: tpu7x:2x2x1
jax: 0.10.0
libtpu: 0.0.40
codegen_flags: <defaults>
</compile_context>

<pallas_src>
import functools

import jax
import jax.numpy as jnp
from jax import lax
from jax.experimental import pallas as pl
from jax.experimental.pallas import tpu as pltpu

BN_EPS = 1e-5
LANE = 128
SUBLANE = 8
MAX_TILE_ROWS = 256          # keeps double-buffered row tiles comfortably inside v7x VMEM
MXU_DTYPE = jnp.bfloat16     # matmul-input dtype; accumulation is always f32


def _round_up(x, m):
    return ((x + m - 1) // m) * m


def _softplus(x):
    # matches F.softplus(beta=1, threshold=20); exp/log1p live on the EUP slot
    return jnp.where(x > 20.0, x, jnp.log1p(jnp.exp(jnp.minimum(x, 20.0))))


def _mm(a, b):
    # MXU matmul: bf16 inputs, f32 accumulation
    return jnp.dot(a.astype(MXU_DTYPE), b.astype(MXU_DTYPE),
                   preferred_element_type=jnp.float32)


# ---------------------------------------------------------------------------
# Fused, row-tiled Plain_encoder kernel (phase axis = 0, row-tile axis = 1)
# ---------------------------------------------------------------------------
def _make_kernel(n_valid, n_padded, tile_rows):
    inv_n = 1.0 / float(n_valid)          # true batch size, NOT the tile size
    mask_rows = (n_padded != n_valid)     # static: do padded rows exist?

    def kernel(x_ref,
               w0_ref, b0_ref, g0_ref, be0_ref,
               w1_ref, b1_ref, g1_ref, be1_ref,
               wh_ref, bh_ref,
               out_ref,
               s0_ref, q0_ref, s1_ref, q1_ref):
        phase = pl.program_id(0)
        t = pl.program_id(1)
        last_t = pl.num_programs(1) - 1

        x = x_ref[...]

        if mask_rows:
            row = t * tile_rows + lax.broadcasted_iota(jnp.int32, (tile_rows, 1), 0)
            row_mask = (row < n_valid).astype(jnp.float32)

        def layer0_pre():
            return _mm(x, w0_ref[...]) + b0_ref[...]

        def accumulate(h, s_ref, q_ref):
            # single-pass stats: per-column sum and sum-of-squares (padded rows masked)
            hm = h * row_mask if mask_rows else h
            @pl.when(t == 0)
            def _():
                s_ref[...] = jnp.zeros_like(s_ref)
                q_ref[...] = jnp.zeros_like(q_ref)
            s_ref[...] += jnp.sum(hm, axis=0, keepdims=True)
            q_ref[...] += jnp.sum(hm * h, axis=0, keepdims=True)

        def finalize(s_ref, q_ref, g, be):
            # turn (sum, sumsq) into per-column (scale, shift), stored in place:
            #   scale = gamma * rsqrt(var + eps) ; shift = beta - mean * scale
            m = s_ref[...] * inv_n
            v = jnp.maximum(q_ref[...] * inv_n - m * m, 0.0)   # guard f32 cancellation
            scale = g * lax.rsqrt(v + BN_EPS)
            s_ref[...] = scale
            q_ref[...] = be - m * scale

        # ---- phase 0: accumulate BN0 statistics over all row tiles ----------
        @pl.when(phase == 0)
        def _():
            h0 = layer0_pre()
            accumulate(h0, s0_ref, q0_ref)
            @pl.when(t == last_t)
            def _():
                finalize(s0_ref, q0_ref, g0_ref[...], be0_ref[...])

        # ---- phase 1: BN0-normalize + softplus, fc1, accumulate BN1 stats ---
        @pl.when(phase == 1)
        def _():
            a0 = _softplus(layer0_pre() * s0_ref[...] + q0_ref[...])
            h1 = _mm(a0, w1_ref[...]) + b1_ref[...]
            accumulate(h1, s1_ref, q1_ref)
            @pl.when(t == last_t)
            def _():
                finalize(s1_ref, q1_ref, g1_ref[...], be1_ref[...])

        # ---- phase 2: full forward with finalized stats, fused heads --------
        @pl.when(phase == 2)
        def _():
            a0 = _softplus(layer0_pre() * s0_ref[...] + q0_ref[...])
            h1 = _mm(a0, w1_ref[...]) + b1_ref[...]
            a1 = _softplus(h1 * s1_ref[...] + q1_ref[...])
            out_ref[...] = _mm(a1, wh_ref[...]) + bh_ref[...]

    return kernel


# ---------------------------------------------------------------------------
# One-time parameter preprocessing: head fusion + lane padding (+ bf16 weights)
# ---------------------------------------------------------------------------
def prepare_params(params):
    f32 = jnp.float32

    def pad2(a, rows, cols, dtype=f32):
        a = a.astype(f32)
        a = jnp.pad(a, ((0, rows - a.shape[0]), (0, cols - a.shape[1])))
        return a.astype(dtype)

    in_dim, g_dim = params["w0"].shape
    h_dim = params["w1"].shape[1]
    l_dim = params["w21"].shape[1]

    in_p = _round_up(in_dim, LANE)
    g_p = _round_up(g_dim, LANE)
    h_p = _round_up(h_dim, LANE)
    out_p = _round_up(2 * l_dim, LANE)

    # fuse fc21/fc22 into a single (hidden, 2L) head -> single MXU pass + one output slab
    wh = jnp.concatenate([params["w21"], params["w22"]], axis=1)
    bh = jnp.concatenate([params["b21"], params["b22"]], axis=1)

    return {
        "w0": pad2(params["w0"], in_p, g_p, MXU_DTYPE),
        "b0": pad2(params["b0"], 1, g_p),
        "bn_g": pad2(params["bn_g"], 1, g_p),
        "bn_b": pad2(params["bn_b"], 1, g_p),
        "w1": pad2(params["w1"], g_p, h_p, MXU_DTYPE),
        "b1": pad2(params["b1"], 1, h_p),
        "bn1_g": pad2(params["bn1_g"], 1, h_p),
        "bn1_b": pad2(params["bn1_b"], 1, h_p),
        "wh": pad2(wh, h_p, out_p, MXU_DTYPE),
        "bh": pad2(bh, 1, out_p),
    }


def _resident(shape):
    # whole array kept resident in VMEM for the full grid (constant block index)
    nd = len(shape)
    return pl.BlockSpec(shape, lambda p, t, _nd=nd: (0,) * _nd)


# ---------------------------------------------------------------------------
# Wrapper
# ---------------------------------------------------------------------------
def plain_encoder_forward(x, pp, latent_dim, idx=None, max_tile_rows=MAX_TILE_ROWS):
    if idx is not None:              # module's optional row selection
        x = x[idx, :]

    f32 = jnp.float32
    n, in_dim = x.shape
    in_p, g_p = pp["w0"].shape
    h_p = pp["w1"].shape[1]
    out_p = pp["wh"].shape[1]

    tile = min(max_tile_rows, _round_up(n, SUBLANE))
    n_pad = _round_up(n, tile)
    n_tiles = n_pad // tile

    # zero-pad rows (masked out of BN stats) and input lanes up to 128 multiples
    xp = jnp.pad(x.astype(f32), ((0, n_pad - n), (0, in_p - in_dim)))

    kernel = _make_kernel(n, n_pad, tile)

    in_specs = [
        pl.BlockSpec((tile, in_p), lambda p, t: (t, 0)),     # x: row-tiled
        _resident((in_p, g_p)), _resident((1, g_p)), _resident((1, g_p)), _resident((1, g_p)),
        _resident((g_p, h_p)), _resident((1, h_p)), _resident((1, h_p)), _resident((1, h_p)),
        _resident((h_p, out_p)), _resident((1, out_p)),
    ]
    out_spec = pl.BlockSpec((tile, out_p), lambda p, t: (t, 0))

    scratch = [
        pltpu.VMEM((1, g_p), f32), pltpu.VMEM((1, g_p), f32),   # BN0 sum/sumsq -> scale/shift
        pltpu.VMEM((1, h_p), f32), pltpu.VMEM((1, h_p), f32),   # BN1 sum/sumsq -> scale/shift
    ]

    out = pl.pallas_call(
        kernel,
        out_shape=jax.ShapeDtypeStruct((n_pad, out_p), f32),
        grid_spec=pltpu.PrefetchScalarGridSpec(
            num_scalar_prefetch=0,
            grid=(3, n_tiles),                      # (phase, row tile); phase must be outer
            in_specs=in_specs,
            out_specs=out_spec,
            scratch_shapes=scratch),
        compiler_params=pltpu.CompilerParams(
            dimension_semantics=("arbitrary", "arbitrary"),
            vmem_limit_bytes=48 * 1024 * 1024),     # explicit headroom (v7x has 64 MiB)
    )(xp,
      pp["w0"], pp["b0"], pp["bn_g"], pp["bn_b"],
      pp["w1"], pp["b1"], pp["bn1_g"], pp["bn1_b"],
      pp["wh"], pp["bh"])

    mu = out[:n, :latent_dim]
    logvar = out[:n, latent_dim:2 * latent_dim]
    return mu, logvar


# ---------------------------------------------------------------------------
# Deterministic parameter construction (synthetic init, matches module shapes)
# ---------------------------------------------------------------------------
def init_params(key, input_dim, hidden_dim, graph_dim, latent_dim):
    ks = jax.random.split(key, 8)
    f32 = jnp.float32

    def xavier(k, fan_in, fan_out):
        bound = jnp.sqrt(6.0 / (fan_in + fan_out))
        return jax.random.uniform(k, (fan_in, fan_out), f32, -bound, bound)

    return {
        "w0": xavier(ks[0], input_dim, graph_dim),
        "b0": 0.01 * jax.random.normal(ks[1], (1, graph_dim), f32),
        "bn_g": jnp.ones((1, graph_dim), f32),
        "bn_b": jnp.zeros((1, graph_dim), f32),
        "w1": xavier(ks[2], graph_dim, hidden_dim),
        "b1": 0.01 * jax.random.normal(ks[3], (1, hidden_dim), f32),
        "bn1_g": jnp.ones((1, hidden_dim), f32),
        "bn1_b": jnp.zeros((1, hidden_dim), f32),
        "w21": xavier(ks[4], hidden_dim, latent_dim),
        "b21": 0.01 * jax.random.normal(ks[5], (1, latent_dim), f32),
        "w22": xavier(ks[6], hidden_dim, latent_dim),
        "b22": 0.01 * jax.random.normal(ks[7], (1, latent_dim), f32),
    }


# Pure-JAX reference (training-mode BN, biased variance), for correctness checks only.
def reference_forward(x, params):
    def bn(h, g, b):
        m = jnp.mean(h, axis=0, keepdims=True)
        v = jnp.mean((h - m) ** 2, axis=0, keepdims=True)
        return (h - m) * lax.rsqrt(v + BN_EPS) * g + b

    h = jax.nn.softplus(bn(x @ params["w0"] + params["b0"], params["bn_g"], params["bn_b"]))
    h = jax.nn.softplus(bn(h @ params["w1"] + params["b1"], params["bn1_g"], params["bn1_b"]))
    return h @ params["w21"] + params["b21"], h @ params["w22"] + params["b22"]


if __name__ == "__main__":
    # small shapes consistent with the module
    N, input_dim, hidden_dim, graph_dim, latent_dim = 40, 32, 32, 16, 8

    key = jax.random.PRNGKey(0)
    k_x, k_p = jax.random.split(key, 2)

    x = jax.random.normal(k_x, (N, input_dim), jnp.float32)
    params = init_params(k_p, input_dim, hidden_dim, graph_dim, latent_dim)
    pp = prepare_params(params)   # one-time: head fusion, lane padding, bf16 weights

    run = jax.jit(lambda xx, p: plain_encoder_forward(xx, p, latent_dim))
    mu, logvar = jax.block_until_ready(run(x, pp))

    assert mu.shape == (N, latent_dim) and logvar.shape == (N, latent_dim)
    assert bool(jnp.all(jnp.isfinite(mu))) and bool(jnp.all(jnp.isfinite(logvar)))

    mu_ref, lv_ref = reference_forward(x, params)
    err = max(float(jnp.max(jnp.abs(mu - mu_ref))),
              float(jnp.max(jnp.abs(logvar - lv_ref))))
    assert err < 1e-1, f"mismatch vs reference: {err}"

    # also exercise the multi-tile + row-masking path (3 row tiles of 16 over 40 rows)
    mu2, lv2 = jax.block_until_ready(
        plain_encoder_forward(x, pp, latent_dim, max_tile_rows=16))
    err2 = max(float(jnp.max(jnp.abs(mu2 - mu_ref))),
               float(jnp.max(jnp.abs(lv2 - lv_ref))))
    assert err2 < 1e-1, f"tiled-path mismatch vs reference: {err2}"

    print("KERNEL_OK")
</pallas_src>

<mosaic_0001>
module attributes {stable_mosaic.version = 11 : i64} {
  func.func @kernel(%arg0: i32, %arg1: i32, %arg2: memref<40x128xf32, #tpu.memory_space<vmem>>, %arg3: memref<128x128xbf16, #tpu.memory_space<vmem>>, %arg4: memref<1x128xf32, #tpu.memory_space<vmem>>, %arg5: memref<1x128xf32, #tpu.memory_space<vmem>>, %arg6: memref<1x128xf32, #tpu.memory_space<vmem>>, %arg7: memref<128x128xbf16, #tpu.memory_space<vmem>>, %arg8: memref<1x128xf32, #tpu.memory_space<vmem>>, %arg9: memref<1x128xf32, #tpu.memory_space<vmem>>, %arg10: memref<1x128xf32, #tpu.memory_space<vmem>>, %arg11: memref<128x128xbf16, #tpu.memory_space<vmem>>, %arg12: memref<1x128xf32, #tpu.memory_space<vmem>>, %arg13: memref<40x128xf32, #tpu.memory_space<vmem>>, %arg14: memref<1x128xf32, #tpu.memory_space<vmem>>, %arg15: memref<1x128xf32, #tpu.memory_space<vmem>>, %arg16: memref<1x128xf32, #tpu.memory_space<vmem>>, %arg17: memref<1x128xf32, #tpu.memory_space<vmem>>) attributes {dimension_semantics = [#tpu.dimension_semantics<arbitrary>, #tpu.dimension_semantics<arbitrary>], iteration_bounds = array<i64: 3, 1>, scalar_prefetch = 0 : i64, scratch_operands = 4 : i64, tpu.core_type = #tpu.core_type<tc>, window_params = [{transform_indices = @transform_0, window_bounds = array<i64: 40, 128>}, {pipeline_mode = #tpu.pipeline_mode<synchronous>, transform_indices = @transform_1, window_bounds = array<i64: 128, 128>}, {pipeline_mode = #tpu.pipeline_mode<synchronous>, transform_indices = @transform_2, window_bounds = array<i64: 1, 128>}, {pipeline_mode = #tpu.pipeline_mode<synchronous>, transform_indices = @transform_3, window_bounds = array<i64: 1, 128>}, {pipeline_mode = #tpu.pipeline_mode<synchronous>, transform_indices = @transform_4, window_bounds = array<i64: 1, 128>}, {pipeline_mode = #tpu.pipeline_mode<synchronous>, transform_indices = @transform_5, window_bounds = array<i64: 128, 128>}, {pipeline_mode = #tpu.pipeline_mode<synchronous>, transform_indices = @transform_6, window_bounds = array<i64: 1, 128>}, {pipeline_mode = #tpu.pipeline_mode<synchronous>, transform_indices = @transform_7, window_bounds = array<i64: 1, 128>}, {pipeline_mode = #tpu.pipeline_mode<synchronous>, transform_indices = @transform_8, window_bounds = array<i64: 1, 128>}, {pipeline_mode = #tpu.pipeline_mode<synchronous>, transform_indices = @transform_9, window_bounds = array<i64: 128, 128>}, {pipeline_mode = #tpu.pipeline_mode<synchronous>, transform_indices = @transform_10, window_bounds = array<i64: 1, 128>}, {transform_indices = @transform_11, window_bounds = array<i64: 40, 128>}]} {
    %c0 = arith.constant 0 : index
    %c0_0 = arith.constant 0 : index
    %0 = vector.load %arg2[%c0, %c0_0] : memref<40x128xf32, #tpu.memory_space<vmem>>, vector<40x128xf32>
    %c0_i32 = arith.constant 0 : i32
    %1 = arith.cmpi eq, %arg0, %c0_i32 : i32
    %2 = arith.extui %1 : i1 to i32
    %c0_i32_1 = arith.constant 0 : i32
    %3 = arith.cmpi ne, %2, %c0_i32_1 : i32
    scf.if %3 {
      %c0_4 = arith.constant 0 : index
      %c0_5 = arith.constant 0 : index
      %10 = vector.load %arg3[%c0_4, %c0_5] : memref<128x128xbf16, #tpu.memory_space<vmem>>, vector<128x128xbf16>
      %11 = arith.truncf %0 : vector<40x128xf32> to vector<40x128xbf16>
      %cst = arith.constant dense<0.000000e+00> : vector<40x128xf32>
      %12 = tpu.matmul %11, %10, %cst {dimension_numbers = #tpu.dot_dimension_numbers<[1], [0], [0], [1], [0, 0, 1, 1], [], []>} : vector<40x128xbf16>, vector<128x128xbf16>, vector<40x128xf32> -> vector<40x128xf32>
      %c0_6 = arith.constant 0 : index
      %c0_7 = arith.constant 0 : index
      %13 = vector.load %arg4[%c0_6, %c0_7] : memref<1x128xf32, #tpu.memory_space<vmem>>, vector<1x128xf32>
      %14 = vector.broadcast %13 : vector<1x128xf32> to vector<40x128xf32>
      %15 = arith.addf %12, %14 : vector<40x128xf32>
      %c0_i32_8 = arith.constant 0 : i32
      %16 = arith.cmpi eq, %arg1, %c0_i32_8 : i32
      %17 = arith.extui %16 : i1 to i32
      %c0_i32_9 = arith.constant 0 : i32
      %18 = arith.cmpi ne, %17, %c0_i32_9 : i32
      scf.if %18 {
        %cst_22 = arith.constant 0.000000e+00 : f32
        %33 = vector.broadcast %cst_22 : f32 to vector<1x128xf32>
        %c0_23 = arith.constant 0 : index
        %c0_24 = arith.constant 0 : index
        %34 = vector.load %arg14[%c0_23, %c0_24] : memref<1x128xf32, #tpu.memory_space<vmem>>, vector<1x128xf32>
        tpu.vector_store %arg14[%c0_23, %c0_24], %33 {strides = array<i32>} : memref<1x128xf32, #tpu.memory_space<vmem>>, vector<1x128xf32>,
        %cst_25 = arith.constant 0.000000e+00 : f32
        %35 = vector.broadcast %cst_25 : f32 to vector<1x128xf32>
        %c0_26 = arith.constant 0 : index
        %c0_27 = arith.constant 0 : index
        %36 = vector.load %arg15[%c0_26, %c0_27] : memref<1x128xf32, #tpu.memory_space<vmem>>, vector<1x128xf32>
        tpu.vector_store %arg15[%c0_26, %c0_27], %35 {strides = array<i32>} : memref<1x128xf32, #tpu.memory_space<vmem>>, vector<1x128xf32>,
      } else {
      }
      %c0_10 = arith.constant 0 : index
      %c0_11 = arith.constant 0 : index
      %19 = vector.load %arg14[%c0_10, %c0_11] : memref<1x128xf32, #tpu.memory_space<vmem>>, vector<1x128xf32>
      %cst_12 = arith.constant dense<0.000000e+00> : vector<128xf32>
      %20 = vector.multi_reduction <add>, %15, %cst_12 [0] : vector<40x128xf32> to vector<128xf32>
      %21 = vector.shape_cast %20 : vector<128xf32> to vector<1x128xf32>
      %22 = arith.addf %19, %21 : vector<1x128xf32>
      %c0_13 = arith.constant 0 : index
      %c0_14 = arith.constant 0 : index
      %23 = vector.load %arg14[%c0_13, %c0_14] : memref<1x128xf32, #tpu.memory_space<vmem>>, vector<1x128xf32>
      tpu.vector_store %arg14[%c0_13, %c0_14], %22 {strides = array<i32>} : memref<1x128xf32, #tpu.memory_space<vmem>>, vector<1x128xf32>,
      %c0_15 = arith.constant 0 : index
      %c0_16 = arith.constant 0 : index
      %24 = vector.load %arg15[%c0_15, %c0_16] : memref<1x128xf32, #tpu.memory_space<vmem>>, vector<1x128xf32>
      %25 = arith.mulf %15, %15 : vector<40x128xf32>
      %cst_17 = arith.constant dense<0.000000e+00> : vector<128xf32>
      %26 = vector.multi_reduction <add>, %25, %cst_17 [0] : vector<40x128xf32> to vector<128xf32>
      %27 = vector.shape_cast %26 : vector<128xf32> to vector<1x128xf32>
      %28 = arith.addf %24, %27 : vector<1x128xf32>
      %c0_18 = arith.constant 0 : index
      %c0_19 = arith.constant 0 : index
      %29 = vector.load %arg15[%c0_18, %c0_19] : memref<1x128xf32, #tpu.memory_space<vmem>>, vector<1x128xf32>
      tpu.vector_store %arg15[%c0_18, %c0_19], %28 {strides = array<i32>} : memref<1x128xf32, #tpu.memory_space<vmem>>, vector<1x128xf32>,
      %c0_i32_20 = arith.constant 0 : i32
      %30 = arith.cmpi eq, %arg1, %c0_i32_20 : i32
      %31 = arith.extui %30 : i1 to i32
      %c0_i32_21 = arith.constant 0 : i32
      %32 = arith.cmpi ne, %31, %c0_i32_21 : i32
      scf.if %32 {
        %c0_22 = arith.constant 0 : index
        %c0_23 = arith.constant 0 : index
        %33 = vector.load %arg5[%c0_22, %c0_23] : memref<1x128xf32, #tpu.memory_space<vmem>>, vector<1x128xf32>
        %c0_24 = arith.constant 0 : index
        %c0_25 = arith.constant 0 : index
        %34 = vector.load %arg6[%c0_24, %c0_25] : memref<1x128xf32, #tpu.memory_space<vmem>>, vector<1x128xf32>
        %c0_26 = arith.constant 0 : index
        %c0_27 = arith.constant 0 : index
        %35 = vector.load %arg14[%c0_26, %c0_27] : memref<1x128xf32, #tpu.memory_space<vmem>>, vector<1x128xf32>
        %cst_28 = arith.constant 2.500000e-02 : f32
        %36 = vector.broadcast %cst_28 : f32 to vector<1x128xf32>
        %37 = arith.mulf %35, %36 : vector<1x128xf32>
        %c0_29 = arith.constant 0 : index
        %c0_30 = arith.constant 0 : index
        %38 = vector.load %arg15[%c0_29, %c0_30] : memref<1x128xf32, #tpu.memory_space<vmem>>, vector<1x128xf32>
        %cst_31 = arith.constant 2.500000e-02 : f32
        %39 = vector.broadcast %cst_31 : f32 to vector<1x128xf32>
        %40 = arith.mulf %38, %39 : vector<1x128xf32>
        %41 = arith.mulf %37, %37 : vector<1x128xf32>
        %42 = arith.subf %40, %41 : vector<1x128xf32>
        %cst_32 = arith.constant 0.000000e+00 : f32
        %43 = vector.broadcast %cst_32 : f32 to vector<1x128xf32>
        %44 = arith.maximumf %42, %43 : vector<1x128xf32>
        %cst_33 = arith.constant 9.99999974E-6 : f32
        %45 = vector.broadcast %cst_33 : f32 to vector<1x128xf32>
        %46 = arith.addf %44, %45 : vector<1x128xf32>
        %47 = math.rsqrt %46 : vector<1x128xf32>
        %48 = arith.mulf %33, %47 : vector<1x128xf32>
        %c0_34 = arith.constant 0 : index
        %c0_35 = arith.constant 0 : index
        %49 = vector.load %arg14[%c0_34, %c0_35] : memref<1x128xf32, #tpu.memory_space<vmem>>, vector<1x128xf32>
        tpu.vector_store %arg14[%c0_34, %c0_35], %48 {strides = array<i32>} : memref<1x128xf32, #tpu.memory_space<vmem>>, vector<1x128xf32>,
        %50 = arith.mulf %37, %48 : vector<1x128xf32>
        %51 = arith.subf %34, %50 : vector<1x128xf32>
        %c0_36 = arith.constant 0 : index
        %c0_37 = arith.constant 0 : index
        %52 = vector.load %arg15[%c0_36, %c0_37] : memref<1x128xf32, #tpu.memory_space<vmem>>, vector<1x128xf32>
        tpu.vector_store %arg15[%c0_36, %c0_37], %51 {strides = array<i32>} : memref<1x128xf32, #tpu.memory_space<vmem>>, vector<1x128xf32>,
      } else {
      }
    } else {
    }
    %c1_i32 = arith.constant 1 : i32
    %4 = arith.cmpi eq, %arg0, %c1_i32 : i32
    %5 = arith.extui %4 : i1 to i32
    %c0_i32_2 = arith.constant 0 : i32
    %6 = arith.cmpi ne, %5, %c0_i32_2 : i32
    scf.if %6 {
      %c0_4 = arith.constant 0 : index
      %c0_5 = arith.constant 0 : index
      %10 = vector.load %arg3[%c0_4, %c0_5] : memref<128x128xbf16, #tpu.memory_space<vmem>>, vector<128x128xbf16>
      %11 = arith.truncf %0 : vector<40x128xf32> to vector<40x128xbf16>
      %cst = arith.constant dense<0.000000e+00> : vector<40x128xf32>
      %12 = tpu.matmul %11, %10, %cst {dimension_numbers = #tpu.dot_dimension_numbers<[1], [0], [0], [1], [0, 0, 1, 1], [], []>} : vector<40x128xbf16>, vector<128x128xbf16>, vector<40x128xf32> -> vector<40x128xf32>
      %c0_6 = arith.constant 0 : index
      %c0_7 = arith.constant 0 : index
      %13 = vector.load %arg4[%c0_6, %c0_7] : memref<1x128xf32, #tpu.memory_space<vmem>>, vector<1x128xf32>
      %14 = vector.broadcast %13 : vector<1x128xf32> to vector<40x128xf32>
      %15 = arith.addf %12, %14 : vector<40x128xf32>
      %c0_8 = arith.constant 0 : index
      %c0_9 = arith.constant 0 : index
      %16 = vector.load %arg14[%c0_8, %c0_9] : memref<1x128xf32, #tpu.memory_space<vmem>>, vector<1x128xf32>
      %17 = vector.broadcast %16 : vector<1x128xf32> to vector<40x128xf32>
      %18 = arith.mulf %15, %17 : vector<40x128xf32>
      %c0_10 = arith.constant 0 : index
      %c0_11 = arith.constant 0 : index
      %19 = vector.load %arg15[%c0_10, %c0_11] : memref<1x128xf32, #tpu.memory_space<vmem>>, vector<1x128xf32>
      %20 = vector.broadcast %19 : vector<1x128xf32> to vector<40x128xf32>
      %21 = arith.addf %18, %20 : vector<40x128xf32>
      %cst_12 = arith.constant 2.000000e+01 : f32
      %22 = vector.broadcast %cst_12 : f32 to vector<40x128xf32>
      %23 = arith.cmpf ogt, %21, %22 : vector<40x128xf32>
      %cst_13 = arith.constant 2.000000e+01 : f32
      %24 = vector.broadcast %cst_13 : f32 to vector<40x128xf32>
      %25 = arith.minimumf %21, %24 : vector<40x128xf32>
      %26 = math.exp %25 : vector<40x128xf32>
      %27 = math.log1p %26 : vector<40x128xf32>
      %28 = arith.select %23, %21, %27 : vector<40x128xi1>, vector<40x128xf32>
      %c0_14 = arith.constant 0 : index
      %c0_15 = arith.constant 0 : index
      %29 = vector.load %arg7[%c0_14, %c0_15] : memref<128x128xbf16, #tpu.memory_space<vmem>>, vector<128x128xbf16>
      %30 = arith.truncf %28 : vector<40x128xf32> to vector<40x128xbf16>
      %cst_16 = arith.constant dense<0.000000e+00> : vector<40x128xf32>
      %31 = tpu.matmul %30, %29, %cst_16 {dimension_numbers = #tpu.dot_dimension_numbers<[1], [0], [0], [1], [0, 0, 1, 1], [], []>} : vector<40x128xbf16>, vector<128x128xbf16>, vector<40x128xf32> -> vector<40x128xf32>
      %c0_17 = arith.constant 0 : index
      %c0_18 = arith.constant 0 : index
      %32 = vector.load %arg8[%c0_17, %c0_18] : memref<1x128xf32, #tpu.memory_space<vmem>>, vector<1x128xf32>
      %33 = vector.broadcast %32 : vector<1x128xf32> to vector<40x128xf32>
      %34 = arith.addf %31, %33 : vector<40x128xf32>
      %c0_i32_19 = arith.constant 0 : i32
      %35 = arith.cmpi eq, %arg1, %c0_i32_19 : i32
      %36 = arith.extui %35 : i1 to i32
      %c0_i32_20 = arith.constant 0 : i32
      %37 = arith.cmpi ne, %36, %c0_i32_20 : i32
      scf.if %37 {
        %cst_33 = arith.constant 0.000000e+00 : f32
        %52 = vector.broadcast %cst_33 : f32 to vector<1x128xf32>
        %c0_34 = arith.constant 0 : index
        %c0_35 = arith.constant 0 : index
        %53 = vector.load %arg16[%c0_34, %c0_35] : memref<1x128xf32, #tpu.memory_space<vmem>>, vector<1x128xf32>
        tpu.vector_store %arg16[%c0_34, %c0_35], %52 {strides = array<i32>} : memref<1x128xf32, #tpu.memory_space<vmem>>, vector<1x128xf32>,
        %cst_36 = arith.constant 0.000000e+00 : f32
        %54 = vector.broadcast %cst_36 : f32 to vector<1x128xf32>
        %c0_37 = arith.constant 0 : index
        %c0_38 = arith.constant 0 : index
        %55 = vector.load %arg17[%c0_37, %c0_38] : memref<1x128xf32, #tpu.memory_space<vmem>>, vector<1x128xf32>
        tpu.vector_store %arg17[%c0_37, %c0_38], %54 {strides = array<i32>} : memref<1x128xf32, #tpu.memory_space<vmem>>, vector<1x128xf32>,
      } else {
      }
      %c0_21 = arith.constant 0 : index
      %c0_22 = arith.constant 0 : index
      %38 = vector.load %arg16[%c0_21, %c0_22] : memref<1x128xf32, #tpu.memory_space<vmem>>, vector<1x128xf32>
      %cst_23 = arith.constant dense<0.000000e+00> : vector<128xf32>
      %39 = vector.multi_reduction <add>, %34, %cst_23 [0] : vector<40x128xf32> to vector<128xf32>
      %40 = vector.shape_cast %39 : vector<128xf32> to vector<1x128xf32>
      %41 = arith.addf %38, %40 : vector<1x128xf32>
      %c0_24 = arith.constant 0 : index
      %c0_25 = arith.constant 0 : index
      %42 = vector.load %arg16[%c0_24, %c0_25] : memref<1x128xf32, #tpu.memory_space<vmem>>, vector<1x128xf32>
      tpu.vector_store %arg16[%c0_24, %c0_25], %41 {strides = array<i32>} : memref<1x128xf32, #tpu.memory_space<vmem>>, vector<1x128xf32>,
      %c0_26 = arith.constant 0 : index
      %c0_27 = arith.constant 0 : index
      %43 = vector.load %arg17[%c0_26, %c0_27] : memref<1x128xf32, #tpu.memory_space<vmem>>, vector<1x128xf32>
      %44 = arith.mulf %34, %34 : vector<40x128xf32>
      %cst_28 = arith.constant dense<0.000000e+00> : vector<128xf32>
      %45 = vector.multi_reduction <add>, %44, %cst_28 [0] : vector<40x128xf32> to vector<128xf32>
      %46 = vector.shape_cast %45 : vector<128xf32> to vector<1x128xf32>
      %47 = arith.addf %43, %46 : vector<1x128xf32>
      %c0_29 = arith.constant 0 : index
      %c0_30 = arith.constant 0 : index
      %48 = vector.load %arg17[%c0_29, %c0_30] : memref<1x128xf32, #tpu.memory_space<vmem>>, vector<1x128xf32>
      tpu.vector_store %arg17[%c0_29, %c0_30], %47 {strides = array<i32>} : memref<1x128xf32, #tpu.memory_space<vmem>>, vector<1x128xf32>,
      %c0_i32_31 = arith.constant 0 : i32
      %49 = arith.cmpi eq, %arg1, %c0_i32_31 : i32
      %50 = arith.extui %49 : i1 to i32
      %c0_i32_32 = arith.constant 0 : i32
      %51 = arith.cmpi ne, %50, %c0_i32_32 : i32
      scf.if %51 {
        %c0_33 = arith.constant 0 : index
        %c0_34 = arith.constant 0 : index
        %52 = vector.load %arg9[%c0_33, %c0_34] : memref<1x128xf32, #tpu.memory_space<vmem>>, vector<1x128xf32>
        %c0_35 = arith.constant 0 : index
        %c0_36 = arith.constant 0 : index
        %53 = vector.load %arg10[%c0_35, %c0_36] : memref<1x128xf32, #tpu.memory_space<vmem>>, vector<1x128xf32>
        %c0_37 = arith.constant 0 : index
        %c0_38 = arith.constant 0 : index
        %54 = vector.load %arg16[%c0_37, %c0_38] : memref<1x128xf32, #tpu.memory_space<vmem>>, vector<1x128xf32>
        %cst_39 = arith.constant 2.500000e-02 : f32
        %55 = vector.broadcast %cst_39 : f32 to vector<1x128xf32>
        %56 = arith.mulf %54, %55 : vector<1x128xf32>
        %c0_40 = arith.constant 0 : index
        %c0_41 = arith.constant 0 : index
        %57 = vector.load %arg17[%c0_40, %c0_41] : memref<1x128xf32, #tpu.memory_space<vmem>>, vector<1x128xf32>
        %cst_42 = arith.constant 2.500000e-02 : f32
        %58 = vector.broadcast %cst_42 : f32 to vector<1x128xf32>
        %59 = arith.mulf %57, %58 : vector<1x128xf32>
        %60 = arith.mulf %56, %56 : vector<1x128xf32>
        %61 = arith.subf %59, %60 : vector<1x128xf32>
        %cst_43 = arith.constant 0.000000e+00 : f32
        %62 = vector.broadcast %cst_43 : f32 to vector<1x128xf32>
        %63 = arith.maximumf %61, %62 : vector<1x128xf32>
        %cst_44 = arith.constant 9.99999974E-6 : f32
        %64 = vector.broadcast %cst_44 : f32 to vector<1x128xf32>
        %65 = arith.addf %63, %64 : vector<1x128xf32>
        %66 = math.rsqrt %65 : vector<1x128xf32>
        %67 = arith.mulf %52, %66 : vector<1x128xf32>
        %c0_45 = arith.constant 0 : index
        %c0_46 = arith.constant 0 : index
        %68 = vector.load %arg16[%c0_45, %c0_46] : memref<1x128xf32, #tpu.memory_space<vmem>>, vector<1x128xf32>
        tpu.vector_store %arg16[%c0_45, %c0_46], %67 {strides = array<i32>} : memref<1x128xf32, #tpu.memory_space<vmem>>, vector<1x128xf32>,
        %69 = arith.mulf %56, %67 : vector<1x128xf32>
        %70 = arith.subf %53, %69 : vector<1x128xf32>
        %c0_47 = arith.constant 0 : index
        %c0_48 = arith.constant 0 : index
        %71 = vector.load %arg17[%c0_47, %c0_48] : memref<1x128xf32, #tpu.memory_space<vmem>>, vector<1x128xf32>
        tpu.vector_store %arg17[%c0_47, %c0_48], %70 {strides = array<i32>} : memref<1x128xf32, #tpu.memory_space<vmem>>, vector<1x128xf32>,
      } else {
      }
    } else {
    }
    %c2_i32 = arith.constant 2 : i32
    %7 = arith.cmpi eq, %arg0, %c2_i32 : i32
    %8 = arith.extui %7 : i1 to i32
    %c0_i32_3 = arith.constant 0 : i32
    %9 = arith.cmpi ne, %8, %c0_i32_3 : i32
    scf.if %9 {
      %c0_4 = arith.constant 0 : index
      %c0_5 = arith.constant 0 : index
      %10 = vector.load %arg3[%c0_4, %c0_5] : memref<128x128xbf16, #tpu.memory_space<vmem>>, vector<128x128xbf16>
      %11 = arith.truncf %0 : vector<40x128xf32> to vector<40x128xbf16>
      %cst = arith.constant dense<0.000000e+00> : vector<40x128xf32>
      %12 = tpu.matmul %11, %10, %cst {dimension_numbers = #tpu.dot_dimension_numbers<[1], [0], [0], [1], [0, 0, 1, 1], [], []>} : vector<40x128xbf16>, vector<128x128xbf16>, vector<40x128xf32> -> vector<40x128xf32>
      %c0_6 = arith.constant 0 : index
      %c0_7 = arith.constant 0 : index
      %13 = vector.load %arg4[%c0_6, %c0_7] : memref<1x128xf32, #tpu.memory_space<vmem>>, vector<1x128xf32>
      %14 = vector.broadcast %13 : vector<1x128xf32> to vector<40x128xf32>
      %15 = arith.addf %12, %14 : vector<40x128xf32>
      %c0_8 = arith.constant 0 : index
      %c0_9 = arith.constant 0 : index
      %16 = vector.load %arg14[%c0_8, %c0_9] : memref<1x128xf32, #tpu.memory_space<vmem>>, vector<1x128xf32>
      %17 = vector.broadcast %16 : vector<1x128xf32> to vector<40x128xf32>
      %18 = arith.mulf %15, %17 : vector<40x128xf32>
      %c0_10 = arith.constant 0 : index
      %c0_11 = arith.constant 0 : index
      %19 = vector.load %arg15[%c0_10, %c0_11] : memref<1x128xf32, #tpu.memory_space<vmem>>, vector<1x128xf32>
      %20 = vector.broadcast %19 : vector<1x128xf32> to vector<40x128xf32>
      %21 = arith.addf %18, %20 : vector<40x128xf32>
      %cst_12 = arith.constant 2.000000e+01 : f32
      %22 = vector.broadcast %cst_12 : f32 to vector<40x128xf32>
      %23 = arith.cmpf ogt, %21, %22 : vector<40x128xf32>
      %cst_13 = arith.constant 2.000000e+01 : f32
      %24 = vector.broadcast %cst_13 : f32 to vector<40x128xf32>
      %25 = arith.minimumf %21, %24 : vector<40x128xf32>
      %26 = math.exp %25 : vector<40x128xf32>
      %27 = math.log1p %26 : vector<40x128xf32>
      %28 = arith.select %23, %21, %27 : vector<40x128xi1>, vector<40x128xf32>
      %c0_14 = arith.constant 0 : index
      %c0_15 = arith.constant 0 : index
      %29 = vector.load %arg7[%c0_14, %c0_15] : memref<128x128xbf16, #tpu.memory_space<vmem>>, vector<128x128xbf16>
      %30 = arith.truncf %28 : vector<40x128xf32> to vector<40x128xbf16>
      %cst_16 = arith.constant dense<0.000000e+00> : vector<40x128xf32>
      %31 = tpu.matmul %30, %29, %cst_16 {dimension_numbers = #tpu.dot_dimension_numbers<[1], [0], [0], [1], [0, 0, 1, 1], [], []>} : vector<40x128xbf16>, vector<128x128xbf16>, vector<40x128xf32> -> vector<40x128xf32>
      %c0_17 = arith.constant 0 : index
      %c0_18 = arith.constant 0 : index
      %32 = vector.load %arg8[%c0_17, %c0_18] : memref<1x128xf32, #tpu.memory_space<vmem>>, vector<1x128xf32>
      %33 = vector.broadcast %32 : vector<1x128xf32> to vector<40x128xf32>
      %34 = arith.addf %31, %33 : vector<40x128xf32>
      %c0_19 = arith.constant 0 : index
      %c0_20 = arith.constant 0 : index
      %35 = vector.load %arg16[%c0_19, %c0_20] : memref<1x128xf32, #tpu.memory_space<vmem>>, vector<1x128xf32>
      %36 = vector.broadcast %35 : vector<1x128xf32> to vector<40x128xf32>
      %37 = arith.mulf %34, %36 : vector<40x128xf32>
      %c0_21 = arith.constant 0 : index
      %c0_22 = arith.constant 0 : index
      %38 = vector.load %arg17[%c0_21, %c0_22] : memref<1x128xf32, #tpu.memory_space<vmem>>, vector<1x128xf32>
      %39 = vector.broadcast %38 : vector<1x128xf32> to vector<40x128xf32>
      %40 = arith.addf %37, %39 : vector<40x128xf32>
      %cst_23 = arith.constant 2.000000e+01 : f32
      %41 = vector.broadcast %cst_23 : f32 to vector<40x128xf32>
      %42 = arith.cmpf ogt, %40, %41 : vector<40x128xf32>
      %cst_24 = arith.constant 2.000000e+01 : f32
      %43 = vector.broadcast %cst_24 : f32 to vector<40x128xf32>
      %44 = arith.minimumf %40, %43 : vector<40x128xf32>
      %45 = math.exp %44 : vector<40x128xf32>
      %46 = math.log1p %45 : vector<40x128xf32>
      %47 = arith.select %42, %40, %46 : vector<40x128xi1>, vector<40x128xf32>
      %c0_25 = arith.constant 0 : index
      %c0_26 = arith.constant 0 : index
      %48 = vector.load %arg11[%c0_25, %c0_26] : memref<128x128xbf16, #tpu.memory_space<vmem>>, vector<128x128xbf16>
      %49 = arith.truncf %47 : vector<40x128xf32> to vector<40x128xbf16>
      %cst_27 = arith.constant dense<0.000000e+00> : vector<40x128xf32>
      %50 = tpu.matmul %49, %48, %cst_27 {dimension_numbers = #tpu.dot_dimension_numbers<[1], [0], [0], [1], [0, 0, 1, 1], [], []>} : vector<40x128xbf16>, vector<128x128xbf16>, vector<40x128xf32> -> vector<40x128xf32>
      %c0_28 = arith.constant 0 : index
      %c0_29 = arith.constant 0 : index
      %51 = vector.load %arg12[%c0_28, %c0_29] : memref<1x128xf32, #tpu.memory_space<vmem>>, vector<1x128xf32>
      %52 = vector.broadcast %51 : vector<1x128xf32> to vector<40x128xf32>
      %53 = arith.addf %50, %52 : vector<40x128xf32>
      %c0_30 = arith.constant 0 : index
      %c0_31 = arith.constant 0 : index
      %54 = vector.load %arg13[%c0_30, %c0_31] : memref<40x128xf32, #tpu.memory_space<vmem>>, vector<40x128xf32>
      tpu.vector_store %arg13[%c0_30, %c0_31], %53 {strides = array<i32>} : memref<40x128xf32, #tpu.memory_space<vmem>>, vector<40x128xf32>,
    } else {
    }
    return
  }
  func.func @transform_0(%arg0: i32, %arg1: i32) -> (i32, i32) {
    %c0_i32 = arith.constant 0 : i32
    %c0_i32_0 = arith.constant 0 : i32
    return %arg1, %c0_i32 : i32, i32
  }
  func.func @transform_1(%arg0: i32, %arg1: i32) -> (i32, i32) {
    %c0_i32 = arith.constant 0 : i32
    %c0_i32_0 = arith.constant 0 : i32
    %c0_i32_1 = arith.constant 0 : i32
    return %c0_i32, %c0_i32_0 : i32, i32
  }
  func.func @transform_2(%arg0: i32, %arg1: i32) -> (i32, i32) {
    %c0_i32 = arith.constant 0 : i32
    %c0_i32_0 = arith.constant 0 : i32
    %c0_i32_1 = arith.constant 0 : i32
    return %c0_i32, %c0_i32_0 : i32, i32
  }
  func.func @transform_3(%arg0: i32, %arg1: i32) -> (i32, i32) {
    %c0_i32 = arith.constant 0 : i32
    %c0_i32_0 = arith.constant 0 : i32
    %c0_i32_1 = arith.constant 0 : i32
    return %c0_i32, %c0_i32_0 : i32, i32
  }
  func.func @transform_4(%arg0: i32, %arg1: i32) -> (i32, i32) {
    %c0_i32 = arith.constant 0 : i32
    %c0_i32_0 = arith.constant 0 : i32
    %c0_i32_1 = arith.constant 0 : i32
    return %c0_i32, %c0_i32_0 : i32, i32
  }
  func.func @transform_5(%arg0: i32, %arg1: i32) -> (i32, i32) {
    %c0_i32 = arith.constant 0 : i32
    %c0_i32_0 = arith.constant 0 : i32
    %c0_i32_1 = arith.constant 0 : i32
    return %c0_i32, %c0_i32_0 : i32, i32
  }
  func.func @transform_6(%arg0: i32, %arg1: i32) -> (i32, i32) {
    %c0_i32 = arith.constant 0 : i32
    %c0_i32_0 = arith.constant 0 : i32
    %c0_i32_1 = arith.constant 0 : i32
    return %c0_i32, %c0_i32_0 : i32, i32
  }
  func.func @transform_7(%arg0: i32, %arg1: i32) -> (i32, i32) {
    %c0_i32 = arith.constant 0 : i32
    %c0_i32_0 = arith.constant 0 : i32
    %c0_i32_1 = arith.constant 0 : i32
    return %c0_i32, %c0_i32_0 : i32, i32
  }
  func.func @transform_8(%arg0: i32, %arg1: i32) -> (i32, i32) {
    %c0_i32 = arith.constant 0 : i32
    %c0_i32_0 = arith.constant 0 : i32
    %c0_i32_1 = arith.constant 0 : i32
    return %c0_i32, %c0_i32_0 : i32, i32
  }
  func.func @transform_9(%arg0: i32, %arg1: i32) -> (i32, i32) {
    %c0_i32 = arith.constant 0 : i32
    %c0_i32_0 = arith.constant 0 : i32
    %c0_i32_1 = arith.constant 0 : i32
    return %c0_i32, %c0_i32_0 : i32, i32
  }
  func.func @transform_10(%arg0: i32, %arg1: i32) -> (i32, i32) {
    %c0_i32 = arith.constant 0 : i32
    %c0_i32_0 = arith.constant 0 : i32
    %c0_i32_1 = arith.constant 0 : i32
    return %c0_i32, %c0_i32_0 : i32, i32
  }
  func.func @transform_11(%arg0: i32, %arg1: i32) -> (i32, i32) {
    %c0_i32 = arith.constant 0 : i32
    %c0_i32_0 = arith.constant 0 : i32
    return %arg1, %c0_i32 : i32, i32
  }
}

</mosaic_0001>

<llo_original>
// kernel: _lambda_.1
$region0: #{_lambda_.1}
  #allocation0 [shape = 'u32[]', space=smem, size = 0x4, offset = 0x4, fixed_abs, tag = 'smem constant byte address 0x4 - core index']
  #allocation1 [shape = 'u32[144,128]{1,0:T(1,128)}', space=vmem, size = 0x12000, scoped, tag = 'internal scratch']
  #allocation2 [shape = 'f32[1,128]{1,0:T(1,128)}', space=vmem, size = 0x200, scoped, tag = 'scratch operand']
  #allocation3 [shape = 'f32[1,128]{1,0:T(1,128)}', space=vmem, size = 0x200, scoped, tag = 'scratch operand']
  #allocation4 [shape = 'f32[1,128]{1,0:T(1,128)}', space=vmem, size = 0x200, scoped, tag = 'scratch operand']
  #allocation5 [shape = 'f32[1,128]{1,0:T(1,128)}', space=vmem, size = 0x200, scoped, tag = 'scratch operand']
  %s0 = inlined_call_operand.vmem [shape: f32[40,128], index: 0, kind: input, shape index: {}]
  %s1 = inlined_call_operand.vmem [shape: bf16[128,128], index: 1, kind: input, shape index: {}]
  %s2 = inlined_call_operand.vmem [shape: f32[1,128], index: 2, kind: input, shape index: {}]
  %s3 = inlined_call_operand.vmem [shape: f32[1,128], index: 3, kind: input, shape index: {}]
  %s4 = inlined_call_operand.vmem [shape: f32[1,128], index: 4, kind: input, shape index: {}]
  %s5 = inlined_call_operand.vmem [shape: bf16[128,128], index: 5, kind: input, shape index: {}]
  %s6 = inlined_call_operand.vmem [shape: f32[1,128], index: 6, kind: input, shape index: {}]
  %s7 = inlined_call_operand.vmem [shape: f32[1,128], index: 7, kind: input, shape index: {}]
  %s8 = inlined_call_operand.vmem [shape: f32[1,128], index: 8, kind: input, shape index: {}]
  %s9 = inlined_call_operand.hbm [shape: bf16[128,128], index: 9, kind: input, shape index: {}]
  %s10 = inlined_call_operand.vmem [shape: f32[1,128], index: 10, kind: input, shape index: {}]
  %s11 = inlined_call_operand.vmem [shape: f32[40,128], index: 11, kind: output, shape index: {}]
  %s12 = sld [smem:[#allocation0]]
  $region109: #{_lambda_.1} parent=0
    _
  %s14 = ssub.s32 1, %s12
  %s15 = scalar_select 0, %s14, %s12
  $region1: #{_lambda_.1} parent=0
    #allocation6 [shape = 'u8[32768]{0}', space=vmem, size = 0x8000, scoped, tag = 'input window, operand 9, single buffered']
    #allocation7 [shape = 's32[2]{0}', space=sflag, size = 0x8, scoped, tag = 'scoped memory for _lambda_.1']
    %16 = vsyncpa [#allocation7], 0
    loop: start=0, step=1, limit=5
    $region2: #{_lambda_.1} parent=1 // loop_pre_header
      _
    $region3: #{_lambda_.1} parent=1 // loop_header
      %s18 = sphi 0, %s22
      %p19 = scmp.ge.s32.totalorder %s18, 5
      %s25 = sphi 0, %s37
      %s26 = sphi 0, %s33
      %s27 = sphi 0, %s25
      %s28 = sphi 0, %s26
      %s29 = sphi 0, %s27
      %s30 = sphi 0, %s28
      %s40 = sphi 0, %s42
      %s43 = sphi 0, %s40
      %s44 = sphi 0, %s43
      %s60 = sphi 0, %s44
      %s64 = sphi 0, %s64
      %s66 = sphi 0, %s64
      %s67 = sphi 0, %s66
      %s81 = sphi 0, %s67
      %s85 = sphi 0, %s85
      %s87 = sphi 0, %s85
      %s88 = sphi 0, %s87
      %s102 = sphi 0, %s88
      %s106 = sphi 0, %s106
      %s108 = sphi 0, %s106
      %s109 = sphi 0, %s108
      %s123 = sphi 0, %s109
      %s127 = sphi 0, %s127
      %s129 = sphi 0, %s127
      %s130 = sphi 0, %s129
      %s144 = sphi 0, %s130
      %s148 = sphi 0, %s148
      %s150 = sphi 0, %s148
      %s151 = sphi 0, %s150
      %s165 = sphi 0, %s151
      %s169 = sphi 0, %s169
      %s171 = sphi 0, %s169
      %s172 = sphi 0, %s171
      %s186 = sphi 0, %s172
      %s190 = sphi 0, %s190
      %s192 = sphi 0, %s190
      %s193 = sphi 0, %s192
      %s207 = sphi 0, %s193
      %s211 = sphi 0, %s211
      %s213 = sphi 0, %s211
      %s214 = sphi 0, %s213
      %s228 = sphi 0, %s214
      %s232 = sphi 0, %s232
      %s234 = sphi 0, %s232
      %s235 = sphi 0, %s234
      %s249 = sphi 0, %s235
      %s253 = sphi 0, %s253
      %s255 = sphi 0, %s253
      %s256 = sphi 0, %s255
      %s270 = sphi 0, %s256
      %s276 = sphi 0, %s278
      %s279 = sphi 0, %s276
      %s280 = sphi 0, %s279
      %s296 = sphi 0, %s280
    $region4: #{_lambda_.1} parent=1 // loop_header_branch
      %21 = sbr.rel (%p19) target = $region8
    $region5: #{_lambda_.1} parent=1 // loop_body
      %s23 = ssub.s32 %s18, 1
      %s24 = ssub.s32 %s18, 2
      %s31 = sadd.s32 1, %s26
      %p32 = scmp.ge.s32.totalorder %s31, 1
      %s33 = scalar_select %p32, 0, %s31
      %s34 = sadd.s32 1, %s25
      %s35 = scalar_select %p32, %s34, %s25
      %p36 = scmp.ge.s32.totalorder %s35, 3
      %s37 = scalar_select %p36, 0, %s35
      %s38 = ssub.s32 %s26, %s33
      %p39 = scmp.eq.s32.totalorder %s38, 0
      %s41 = sadd.s32 %s40, 1
      %s42 = scalar_select %p39, %s40, %s41
      %p45 = pneg %p39
      %p46 = scmp.eq.s32.totalorder %s18, 2
      %p47 = por %p45, %p46
      %p48 = scmp.ne.s32.totalorder %s40, %s43
      %p49 = scmp.eq.s32.totalorder %s18, 0
      %p50 = por %p48, %p49
      %p51 = scmp.ne.s32.totalorder %s40, %s43
      %p52 = scmp.eq.s32.totalorder %s23, 2
      %p53 = por %p51, %p52
      %p54 = scmp.ne.s32.totalorder %s43, %s44
      %p55 = scmp.eq.s32.totalorder %s23, 0
      %p56 = por %p54, %p55
      %p57 = scmp.ne.s32.totalorder %s43, %s44
      %p58 = scmp.eq.s32.totalorder %s24, 2
      %p59 = por %p57, %p58
      %p61 = scmp.ne.s32.totalorder %s44, %s60
      %p62 = scmp.eq.s32.totalorder %s24, 0
      %p63 = por %p61, %p62
      %s65 = sadd.s32 %s64, 1
      %p68 = scmp.eq.s32.totalorder %s18, 2
      %p69 = scmp.ne.s32.totalorder %s64, %s66
      %p70 = scmp.eq.s32.totalorder %s18, 0
      %p71 = por %p69, %p70
      %p72 = scmp.ne.s32.totalorder %s64, %s66
      %p73 = scmp.eq.s32.totalorder %s23, 2
      %p74 = por %p72, %p73
      %p75 = scmp.ne.s32.totalorder %s66, %s67
      %p76 = scmp.eq.s32.totalorder %s23, 0
      %p77 = por %p75, %p76
      %p78 = scmp.ne.s32.totalorder %s66, %s67
      %p79 = scmp.eq.s32.totalorder %s24, 2
      %p80 = por %p78, %p79
      %p82 = scmp.ne.s32.totalorder %s67, %s81
      %p83 = scmp.eq.s32.totalorder %s24, 0
      %p84 = por %p82, %p83
      %s86 = sadd.s32 %s85, 1
      %p89 = scmp.eq.s32.totalorder %s18, 2
      %p90 = scmp.ne.s32.totalorder %s85, %s87
      %p91 = scmp.eq.s32.totalorder %s18, 0
      %p92 = por %p90, %p91
      %p93 = scmp.ne.s32.totalorder %s85, %s87
      %p94 = scmp.eq.s32.totalorder %s23, 2
      %p95 = por %p93, %p94
      %p96 = scmp.ne.s32.totalorder %s87, %s88
      %p97 = scmp.eq.s32.totalorder %s23, 0
      %p98 = por %p96, %p97
      %p99 = scmp.ne.s32.totalorder %s87, %s88
      %p100 = scmp.eq.s32.totalorder %s24, 2
      %p101 = por %p99, %p100
      %p103 = scmp.ne.s32.totalorder %s88, %s102
      %p104 = scmp.eq.s32.totalorder %s24, 0
      %p105 = por %p103, %p104
      %s107 = sadd.s32 %s106, 1
      %p110 = scmp.eq.s32.totalorder %s18, 2
      %p111 = scmp.ne.s32.totalorder %s106, %s108
      %p112 = scmp.eq.s32.totalorder %s18, 0
      %p113 = por %p111, %p112
      %p114 = scmp.ne.s32.totalorder %s106, %s108
      %p115 = scmp.eq.s32.totalorder %s23, 2
      %p116 = por %p114, %p115
      %p117 = scmp.ne.s32.totalorder %s108, %s109
      %p118 = scmp.eq.s32.totalorder %s23, 0
      %p119 = por %p117, %p118
      %p120 = scmp.ne.s32.totalorder %s108, %s109
      %p121 = scmp.eq.s32.totalorder %s24, 2
      %p122 = por %p120, %p121
      %p124 = scmp.ne.s32.totalorder %s109, %s123
      %p125 = scmp.eq.s32.totalorder %s24, 0
      %p126 = por %p124, %p125
      %s128 = sadd.s32 %s127, 1
      %p131 = scmp.eq.s32.totalorder %s18, 2
      %p132 = scmp.ne.s32.totalorder %s127, %s129
      %p133 = scmp.eq.s32.totalorder %s18, 0
      %p134 = por %p132, %p133
      %p135 = scmp.ne.s32.totalorder %s127, %s129
      %p136 = scmp.eq.s32.totalorder %s23, 2
      %p137 = por %p135, %p136
      %p138 = scmp.ne.s32.totalorder %s129, %s130
      %p139 = scmp.eq.s32.totalorder %s23, 0
      %p140 = por %p138, %p139
      %p141 = scmp.ne.s32.totalorder %s129, %s130
      %p142 = scmp.eq.s32.totalorder %s24, 2
      %p143 = por %p141, %p142
      %p145 = scmp.ne.s32.totalorder %s130, %s144
      %p146 = scmp.eq.s32.totalorder %s24, 0
      %p147 = por %p145, %p146
      %s149 = sadd.s32 %s148, 1
      %p152 = scmp.eq.s32.totalorder %s18, 2
      %p153 = scmp.ne.s32.totalorder %s148, %s150
      %p154 = scmp.eq.s32.totalorder %s18, 0
      %p155 = por %p153, %p154
      %p156 = scmp.ne.s32.totalorder %s148, %s150
      %p157 = scmp.eq.s32.totalorder %s23, 2
      %p158 = por %p156, %p157
      %p159 = scmp.ne.s32.totalorder %s150, %s151
      %p160 = scmp.eq.s32.totalorder %s23, 0
      %p161 = por %p159, %p160
      %p162 = scmp.ne.s32.totalorder %s150, %s151
      %p163 = scmp.eq.s32.totalorder %s24, 2
      %p164 = por %p162, %p163
      %p166 = scmp.ne.s32.totalorder %s151, %s165
      %p167 = scmp.eq.s32.totalorder %s24, 0
      %p168 = por %p166, %p167
      %s170 = sadd.s32 %s169, 1
      %p173 = scmp.eq.s32.totalorder %s18, 2
      %p174 = scmp.ne.s32.totalorder %s169, %s171
      %p175 = scmp.eq.s32.totalorder %s18, 0
      %p176 = por %p174, %p175
      %p177 = scmp.ne.s32.totalorder %s169, %s171
      %p178 = scmp.eq.s32.totalorder %s23, 2
      %p179 = por %p177, %p178
      %p180 = scmp.ne.s32.totalorder %s171, %s172
      %p181 = scmp.eq.s32.totalorder %s23, 0
      %p182 = por %p180, %p181
      %p183 = scmp.ne.s32.totalorder %s171, %s172
      %p184 = scmp.eq.s32.totalorder %s24, 2
      %p185 = por %p183, %p184
      %p187 = scmp.ne.s32.totalorder %s172, %s186
      %p188 = scmp.eq.s32.totalorder %s24, 0
      %p189 = por %p187, %p188
      %s191 = sadd.s32 %s190, 1
      %p194 = scmp.eq.s32.totalorder %s18, 2
      %p195 = scmp.ne.s32.totalorder %s190, %s192
      %p196 = scmp.eq.s32.totalorder %s18, 0
      %p197 = por %p195, %p196
      %p198 = scmp.ne.s32.totalorder %s190, %s192
      %p199 = scmp.eq.s32.totalorder %s23, 2
      %p200 = por %p198, %p199
      %p201 = scmp.ne.s32.totalorder %s192, %s193
      %p202 = scmp.eq.s32.totalorder %s23, 0
      %p203 = por %p201, %p202
      %p204 = scmp.ne.s32.totalorder %s192, %s193
      %p205 = scmp.eq.s32.totalorder %s24, 2
      %p206 = por %p204, %p205
      %p208 = scmp.ne.s32.totalorder %s193, %s207
      %p209 = scmp.eq.s32.totalorder %s24, 0
      %p210 = por %p208, %p209
      %s212 = sadd.s32 %s211, 1
      %p215 = scmp.eq.s32.totalorder %s18, 2
      %p216 = scmp.ne.s32.totalorder %s211, %s213
      %p217 = scmp.eq.s32.totalorder %s18, 0
      %p218 = por %p216, %p217
      %p219 = scmp.ne.s32.totalorder %s211, %s213
      %p220 = scmp.eq.s32.totalorder %s23, 2
      %p221 = por %p219, %p220
      %p222 = scmp.ne.s32.totalorder %s213, %s214
      %p223 = scmp.eq.s32.totalorder %s23, 0
      %p224 = por %p222, %p223
      %p225 = scmp.ne.s32.totalorder %s213, %s214
      %p226 = scmp.eq.s32.totalorder %s24, 2
      %p227 = por %p225, %p226
      %p229 = scmp.ne.s32.totalorder %s214, %s228
      %p230 = scmp.eq.s32.totalorder %s24, 0
      %p231 = por %p229, %p230
      %s233 = sadd.s32 %s232, 1
      %p236 = scmp.eq.s32.totalorder %s18, 2
      %p237 = scmp.ne.s32.totalorder %s232, %s234
      %p238 = scmp.eq.s32.totalorder %s18, 0
      %p239 = por %p237, %p238
      %p240 = scmp.ne.s32.totalorder %s232, %s234
      %p241 = scmp.eq.s32.totalorder %s23, 2
      %p242 = por %p240, %p241
      %p243 = scmp.ne.s32.totalorder %s234, %s235
      %p244 = scmp.eq.s32.totalorder %s23, 0
      %p245 = por %p243, %p244
      %p246 = scmp.ne.s32.totalorder %s234, %s235
      %p247 = scmp.eq.s32.totalorder %s24, 2
      %p248 = por %p246, %p247
      %p250 = scmp.ne.s32.totalorder %s235, %s249
      %p251 = scmp.eq.s32.totalorder %s24, 0
      %p252 = por %p250, %p251
      %s254 = sadd.s32 %s253, 1
      %p257 = scmp.eq.s32.totalorder %s18, 2
      %p258 = scmp.ne.s32.totalorder %s253, %s255
      %p259 = scmp.eq.s32.totalorder %s18, 0
      %p260 = por %p258, %p259
      %p261 = scmp.ne.s32.totalorder %s253, %s255
      %p262 = scmp.eq.s32.totalorder %s23, 2
      %p263 = por %p261, %p262
      %p264 = scmp.ne.s32.totalorder %s255, %s256
      %p265 = scmp.eq.s32.totalorder %s23, 0
      %p266 = por %p264, %p265
      %p267 = scmp.ne.s32.totalorder %s255, %s256
      %p268 = scmp.eq.s32.totalorder %s24, 2
      %p269 = por %p267, %p268
      %p271 = scmp.ne.s32.totalorder %s256, %s270
      %p272 = scmp.eq.s32.totalorder %s24, 0
      %p273 = por %p271, %p272
      %s274 = ssub.s32 %s26, %s33
      %p275 = scmp.eq.s32.totalorder %s274, 0
      %s277 = sadd.s32 %s276, 1
      %s278 = scalar_select %p275, %s276, %s277
      %p281 = pneg %p275
      %p282 = scmp.eq.s32.totalorder %s18, 2
      %p283 = por %p281, %p282
      %p284 = scmp.ne.s32.totalorder %s276, %s279
      %p285 = scmp.eq.s32.totalorder %s18, 0
      %p286 = por %p284, %p285
      %p287 = scmp.ne.s32.totalorder %s276, %s279
      %p288 = scmp.eq.s32.totalorder %s23, 2
      %p289 = por %p287, %p288
      %p290 = scmp.ne.s32.totalorder %s279, %s280
      %p291 = scmp.eq.s32.totalorder %s23, 0
      %p292 = por %p290, %p291
      %p293 = scmp.ne.s32.totalorder %s279, %s280
      %p294 = scmp.eq.s32.totalorder %s24, 2
      %p295 = por %p293, %p294
      %p297 = scmp.ne.s32.totalorder %s280, %s296
      %p298 = scmp.eq.s32.totalorder %s24, 0
      %p299 = por %p297, %p298
      %p300 = scmp.le.s32.totalorder 1, %s18
      %p301 = scmp.lt.s32.totalorder %s18, 4
      %p302 = pnand %p300, %p301
      %p303 = pneg %p302
      // Predicated region
      $region9: #{_lambda_.1} parent=5 // pred_check
        _
      $region10: #{_lambda_.1} parent=5 // pred_check_branch
        %305 = sbr.rel (%p302) target = $region12
      $region11: #{_lambda_.1} parent=5 // pred_region
        %s306 = ssub.s32 %s18, 1
        // Predicated region
        $region13: #{_lambda_.1} parent=11 // pred_check
          %p307 = pneg %p56
        $region14: #{_lambda_.1} parent=11 // pred_check_branch
          %309 = sbr.rel (%p307) target = $region16
        $region15: #{_lambda_.1} parent=11 // pred_region
          %s310 = smul.u32 5, %s28
          %p311 = scmp.lt.s32.totalorder %s310, 4
          %s312 = scalar_select %p311, %s310, 4
          %s313 = smul.addr %s312, 8
          %s314 = scalar_lea.vmem %s0, %s313
          %s315 = smul.u32 5, %s28
        $region16: #{_lambda_.1} parent=11 // pred_fallthru
          _
        // Predicated region
        $region17: #{_lambda_.1} parent=11 // pred_check
          %p316 = pneg %p77
        $region18: #{_lambda_.1} parent=11 // pred_check_branch
          %318 = sbr.rel (%p316) target = $region20
        $region19: #{_lambda_.1} parent=11 // pred_region
          _
        $region20: #{_lambda_.1} parent=11 // pred_fallthru
          _
        // Predicated region
        $region21: #{_lambda_.1} parent=11 // pred_check
          %p319 = pneg %p98
        $region22: #{_lambda_.1} parent=11 // pred_check_branch
          %321 = sbr.rel (%p319) target = $region24
        $region23: #{_lambda_.1} parent=11 // pred_region
          _
        $region24: #{_lambda_.1} parent=11 // pred_fallthru
          _
        // Predicated region
        $region25: #{_lambda_.1} parent=11 // pred_check
          %p322 = pneg %p119
        $region26: #{_lambda_.1} parent=11 // pred_check_branch
          %324 = sbr.rel (%p322) target = $region28
        $region27: #{_lambda_.1} parent=11 // pred_region
          _
        $region28: #{_lambda_.1} parent=11 // pred_fallthru
          _
        // Predicated region
        $region29: #{_lambda_.1} parent=11 // pred_check
          %p325 = pneg %p140
        $region30: #{_lambda_.1} parent=11 // pred_check_branch
          %327 = sbr.rel (%p325) target = $region32
        $region31: #{_lambda_.1} parent=11 // pred_region
          _
        $region32: #{_lambda_.1} parent=11 // pred_fallthru
          _
        // Predicated region
        $region33: #{_lambda_.1} parent=11 // pred_check
          %p328 = pneg %p161
        $region34: #{_lambda_.1} parent=11 // pred_check_branch
          %330 = sbr.rel (%p328) target = $region36
        $region35: #{_lambda_.1} parent=11 // pred_region
          _
        $region36: #{_lambda_.1} parent=11 // pred_fallthru
          _
        // Predicated region
        $region37: #{_lambda_.1} parent=11 // pred_check
          %p331 = pneg %p182
        $region38: #{_lambda_.1} parent=11 // pred_check_branch
          %333 = sbr.rel (%p331) target = $region40
        $region39: #{_lambda_.1} parent=11 // pred_region
          _
        $region40: #{_lambda_.1} parent=11 // pred_fallthru
          _
        // Predicated region
        $region41: #{_lambda_.1} parent=11 // pred_check
          %p334 = pneg %p203
        $region42: #{_lambda_.1} parent=11 // pred_check_branch
          %336 = sbr.rel (%p334) target = $region44
        $region43: #{_lambda_.1} parent=11 // pred_region
          _
        $region44: #{_lambda_.1} parent=11 // pred_fallthru
          _
        // Predicated region
        $region45: #{_lambda_.1} parent=11 // pred_check
          %p337 = pneg %p224
        $region46: #{_lambda_.1} parent=11 // pred_check_branch
          %339 = sbr.rel (%p337) target = $region48
        $region47: #{_lambda_.1} parent=11 // pred_region
          _
        $region48: #{_lambda_.1} parent=11 // pred_fallthru
          _
        // Predicated region
        $region49: #{_lambda_.1} parent=11 // pred_check
          %p340 = pneg %p245
        $region50: #{_lambda_.1} parent=11 // pred_check_branch
          %342 = sbr.rel (%p340) target = $region52
        $region51: #{_lambda_.1} parent=11 // pred_region
          %s344 = ssub.s32 1024, 1024
          %345 = vsyncadd [#allocation7], %s344
          %s346 = sshll.u32 [#allocation6], 4
          %s347 = int_to_ptr.vmem [resolvable:$true] %s346
          %352 = dma.hbm_to_vmem [thread:$0]  %s9, 1024, %s347, [#allocation7], 64, 64, 4
        $region52: #{_lambda_.1} parent=11 // pred_fallthru
          _
        // Predicated region
        $region53: #{_lambda_.1} parent=11 // pred_check
          %p353 = pneg %p266
        $region54: #{_lambda_.1} parent=11 // pred_check_branch
          %355 = sbr.rel (%p353) target = $region56
        $region55: #{_lambda_.1} parent=11 // pred_region
          _
        $region56: #{_lambda_.1} parent=11 // pred_fallthru
          _
      $region12: #{_lambda_.1} parent=5 // pred_fallthru
        _
      %p356 = scmp.lt.s32.totalorder %s18, 3
      // Predicated region
      $region57: #{_lambda_.1} parent=5 // pred_check
        %p357 = pneg %p356
      $region58: #{_lambda_.1} parent=5 // pred_check_branch
        %359 = sbr.rel (%p357) target = $region60
      $region59: #{_lambda_.1} parent=5 // pred_region
        _
      $region60: #{_lambda_.1} parent=5 // pred_fallthru
        _
      %p360 = scmp.le.s32.totalorder 1, %s18
      %p361 = scmp.lt.s32.totalorder %s18, 4
      %p362 = pnand %p360, %p361
      %p363 = pneg %p362
      // Predicated region
      $region61: #{_lambda_.1} parent=5 // pred_check
        _
      $region62: #{_lambda_.1} parent=5 // pred_check_branch
        %365 = sbr.rel (%p362) target = $region64
      $region63: #{_lambda_.1} parent=5 // pred_region
        %s366 = ssub.s32 %s18, 1
        // Predicated region
        $region65: #{_lambda_.1} parent=63 // pred_check
          %p367 = pneg %p245
        $region66: #{_lambda_.1} parent=63 // pred_check_branch
          %369 = sbr.rel (%p367) target = $region68
        $region67: #{_lambda_.1} parent=63 // pred_region
          %370 = dma.done [#allocation7], 1024
        $region68: #{_lambda_.1} parent=63 // pred_fallthru
          _
        %s371 = smul.u32 5, %s28
        %p372 = scmp.lt.s32.totalorder %s371, 4
        %s373 = scalar_select %p372, %s371, 4
        %s374 = smul.addr %s373, 8
        %s375 = scalar_lea.vmem %s0, %s374
        %p376 = pneg %p56
        %p377 = pneg %p53
        %p378 = pneg %p77
        %p379 = pneg %p74
        %p380 = pneg %p98
        %p381 = pneg %p95
        %p382 = pneg %p119
        %p383 = pneg %p116
        %p384 = pneg %p140
        %p385 = pneg %p137
        %p386 = pneg %p161
        %p387 = pneg %p158
        %p388 = pneg %p182
        %p389 = pneg %p179
        %p390 = pneg %p203
        %p391 = pneg %p200
        %p392 = pneg %p224
        %p393 = pneg %p221
        %p394 = pneg %p245
        %p395 = pneg %p242
        %p396 = pneg %p266
        %p397 = pneg %p263
        %p398 = pneg %p292
        %p399 = pneg %p289
        %s400 = smul.u32 5, %s28
        %p401 = scmp.lt.s32.totalorder %s400, 4
        %s402 = scalar_select %p401, %s400, 4
        %s403 = smul.addr %s402, 8
        %s404 = scalar_lea.vmem %s11, %s403
        %s405 = smul.u32 5, %s28
        %p406 = scmp.lt.s32.totalorder %s405, 4
        %s407 = scalar_select %p406, %s405, 4
        %s408 = smul.addr %s407, 8
        %s409 = scalar_lea.vmem %s0, %s408
        %s410 = smul.u32 5, %s28
        %s411 = smul.u32 5, %s28
        %p412 = scmp.lt.s32.totalorder %s411, 4
        %s413 = scalar_select %p412, %s411, 4
        %s414 = smul.addr %s413, 8
        %s415 = scalar_lea.vmem %s11, %s414
        %s416 = smul.u32 5, %s28
        %v418 = vld [vmem:[%s409] sm:$0xff]
        %v419 = vld [vmem:[%s409 + $0x8] sm:$0xff]
        %v420 = vld [vmem:[%s409 + $0x10] sm:$0xff]
        %v421 = vld [vmem:[%s409 + $0x18] sm:$0xff]
        %v422 = vld [vmem:[%s409 + $0x20] sm:$0xff]
        %p423 = scmp.eq.s32.totalorder %s27, 0
        // Predicated region
        $region69: #{_lambda_.1} parent=63 // pred_check
          %p424 = pneg %p423
        $region70: #{_lambda_.1} parent=63 // pred_check_branch
          %426 = sbr.rel (%p424) target = $region72
        $region71: #{_lambda_.1} parent=63 // pred_region
          %v427 = vld [vmem:[%s1] sm:$0xf]
          %v428 = vld [vmem:[%s1 + $0x4] sm:$0xf]
          %v429 = vld [vmem:[%s1 + $0x8] sm:$0xf]
          %v430 = vld [vmem:[%s1 + $0xc] sm:$0xf]
          %v431 = vld [vmem:[%s1 + $0x10] sm:$0xf]
          %v432 = vld [vmem:[%s1 + $0x14] sm:$0xf]
          %v433 = vld [vmem:[%s1 + $0x18] sm:$0xf]
          %v434 = vld [vmem:[%s1 + $0x1c] sm:$0xf]
          %v435 = vld [vmem:[%s1 + $0x20] sm:$0xf]
          %v436 = vld [vmem:[%s1 + $0x24] sm:$0xf]
          %v437 = vld [vmem:[%s1 + $0x28] sm:$0xf]
          %v438 = vld [vmem:[%s1 + $0x2c] sm:$0xf]
          %v439 = vld [vmem:[%s1 + $0x30] sm:$0xf]
          %v440 = vld [vmem:[%s1 + $0x34] sm:$0xf]
          %v441 = vld [vmem:[%s1 + $0x38] sm:$0xf]
          %v442 = vld [vmem:[%s1 + $0x3c] sm:$0xf]
          %v443 = vpack.c.bf16 %v419, %v418
          %v444 = vpack.c.bf16 %v421, %v420
          %v445 = vpack.c.bf16 %v422, %v422
          %v446 = vld [vmem:[%s2] sm:$0x1]
          %v448 = vlaneseq
          %v449 = vshrl.u32 %v448, 7
          %v450 = vsub.s32 0, %v449
          %v451 = vrot.slane %v446, %v450
          %v469 = vunpack.c.l.b16 %v427
          %v470 = vunpack.c.l.b16 %v428
          %v471 = vunpack.c.l.b16 %v429
          %v472 = vunpack.c.l.b16 %v430
          %v473 = vunpack.c.l.b16 %v431
          %v474 = vunpack.c.l.b16 %v432
          %v475 = vunpack.c.l.b16 %v433
          %v476 = vunpack.c.l.b16 %v434
          %v477 = vunpack.c.l.b16 %v435
          %v478 = vunpack.c.l.b16 %v436
          %v479 = vunpack.c.l.b16 %v437
          %v480 = vunpack.c.l.b16 %v438
          %v481 = vunpack.c.l.b16 %v439
          %v482 = vunpack.c.l.b16 %v440
          %v483 = vunpack.c.l.b16 %v441
          %v484 = vunpack.c.l.b16 %v442
          %v485 = vpack.c.b16 %v470, %v469
          %v486 = vpack.c.b16 %v472, %v471
          %v487 = vpack.c.b16 %v474, %v473
          %v488 = vpack.c.b16 %v476, %v475
          %v489 = vpack.c.b16 %v478, %v477
          %v490 = vpack.c.b16 %v480, %v479
          %v491 = vpack.c.b16 %v482, %v481
          %v492 = vpack.c.b16 %v484, %v483
          %501 = vmatprep.subr.bf16.mxu0 0
          %502 = vmatpush1.bf16.msra.mxu0 %v485
          %503 = vmatprep.subr.bf16.mxu0 0
          %504 = vmatpush1.bf16.msra.mxu0 %v486
          %505 = vmatprep.subr.bf16.mxu0 0
          %506 = vmatpush1.bf16.msra.mxu0 %v487
          %507 = vmatprep.subr.bf16.mxu0 0
          %508 = vmatpush1.bf16.msra.mxu0 %v488
          %509 = vmatprep.subr.bf16.mxu0 0
          %510 = vmatpush1.bf16.msra.mxu0 %v489
          %511 = vmatprep.subr.bf16.mxu0 0
          %512 = vmatpush1.bf16.msra.mxu0 %v490
          %513 = vmatprep.subr.bf16.mxu0 0
          %514 = vmatpush1.bf16.msra.mxu0 %v491
          %515 = vmatprep.subr.bf16.mxu0 0
          %516 = vmatpush1.bf16.msra.mxu0 %v492
          %517 = vmatprep.subr.bf16.mxu0 0
          %518 = vmatpush1.bf16.msra.mxu0 0
          %519 = vmatprep.subr.bf16.mxu0 0
          %520 = vmatpush1.bf16.msra.mxu0 0
          %521 = vmatprep.subr.bf16.mxu0 0
          %522 = vmatpush1.bf16.msra.mxu0 0
          %523 = vmatprep.subr.bf16.mxu0 0
          %524 = vmatpush1.bf16.msra.mxu0 0
          %525 = vmatprep.subr.bf16.mxu0 0
          %526 = vmatpush1.bf16.msra.mxu0 0
          %527 = vmatprep.subr.bf16.mxu0 0
          %528 = vmatpush1.bf16.msra.mxu0 0
          %529 = vmatprep.subr.bf16.mxu0 0
          %530 = vmatpush1.bf16.msra.mxu0 0
          %531 = vmatprep.subr.bf16.mxu0 0
          %532 = vmatpush1.bf16.msra.mxu0 0
          %533 = vmatprep.mubr.bf16.mxu0 0
          %534 = vmatmul.mubr.bf16.gmra.mrb[0].mxu0 %v443
          %v535 = vpop.f32.mrb[0].mxu0
          %v536 = vadd.f32 %v451, %v535
          %v537 = vpop.f32.mrb[0].mxu0
          %v538 = vpop.f32.mrb[0].mxu0
          %v539 = vadd.f32 %v451, %v538
          %v540 = vpop.f32.mrb[0].mxu0
          %541 = vmatprep.mubr.bf16.mxu0 0
          %542 = vmatmul.mubr.bf16.gmra.mrb[0].mxu0 %v444
          %v543 = vpop.f32.mrb[0].mxu0
          %v544 = vadd.f32 %v451, %v543
          %v545 = vpop.f32.mrb[0].mxu0
          %v546 = vpop.f32.mrb[0].mxu0
          %v547 = vadd.f32 %v451, %v546
          %v548 = vpop.f32.mrb[0].mxu0
          %549 = vmatprep.mubr.bf16.mxu0 0
          %550 = vmatmul.mubr.bf16.gmra.mrb[0].mxu0 %v445
          %v551 = vpop.f32.mrb[0].mxu0
          %v552 = vadd.f32 %v451, %v551
          %v553 = vpop.f32.mrb[0].mxu0
          %v554 = vpop.f32.mrb[0].mxu0
          %v555 = vpop.f32.mrb[0].mxu0
          %556 = vdwg.mxu0
          %p557 = scmp.eq.s32.totalorder %s28, 0
          // Predicated region
          $region73: #{_lambda_.1} parent=71 // pred_check
            %p558 = pneg %p557
          $region74: #{_lambda_.1} parent=71 // pred_check_branch
            %560 = sbr.rel (%p558) target = $region76
          $region75: #{_lambda_.1} parent=71 // pred_region
            %561 = vst [vmem:[#allocation2] sm:$0x1] 0.0
            %562 = vst [vmem:[#allocation3] sm:$0x1] 0.0
          $region76: #{_lambda_.1} parent=71 // pred_fallthru
            _
          %v563 = vld [vmem:[#allocation2] sm:$0x1]
          %v564 = vadd.f32 %v536, %v539
          %v565 = vadd.f32 %v564, %v544
          %v566 = vadd.f32 %v565, %v547
          %v567 = vadd.f32 %v566, %v552
          %v568 = vrot.slane %v567, 4
          %v569 = vadd.f32 %v567, %v568
          %v570 = vrot.slane %v569, 2
          %v571 = vadd.f32 %v569, %v570
          %v572 = vrot.slane %v571, 1
          %v573 = vadd.f32 %v571, %v572
          %v574 = vadd.f32 %v563, %v573
          %575 = vst [vmem:[#allocation2] sm:$0x1] %v574
          %v576 = vld [vmem:[#allocation3] sm:$0x1]
          %v577 = vmul.f32 %v536, %v536
          %v578 = vmul.f32 %v539, %v539
          %v579 = vmul.f32 %v544, %v544
          %v580 = vmul.f32 %v547, %v547
          %v581 = vmul.f32 %v552, %v552
          %v582 = vadd.f32 %v577, %v578
          %v583 = vadd.f32 %v582, %v579
          %v584 = vadd.f32 %v583, %v580
          %v585 = vadd.f32 %v584, %v581
          %v586 = vrot.slane %v585, 4
          %v587 = vadd.f32 %v585, %v586
          %v588 = vrot.slane %v587, 2
          %v589 = vadd.f32 %v587, %v588
          %v590 = vrot.slane %v589, 1
          %v591 = vadd.f32 %v589, %v590
          %v592 = vadd.f32 %v576, %v591
          %593 = vst [vmem:[#allocation3] sm:$0x1] %v592
          // Predicated region
          $region77: #{_lambda_.1} parent=71 // pred_check
            %p594 = pneg %p557
          $region78: #{_lambda_.1} parent=71 // pred_check_branch
            %596 = sbr.rel (%p594) target = $region80
          $region79: #{_lambda_.1} parent=71 // pred_region
            %v597 = vld [vmem:[%s3] sm:$0x1]
            %v598 = vld [vmem:[%s4] sm:$0x1]
            %v599 = vld [vmem:[#allocation2] sm:$0x1]
            %v600 = vmul.f32 %v599, 0.025
            %v601 = vld [vmem:[#allocation3] sm:$0x1]
            %v602 = vmul.f32 %v601, 0.025
            %v603 = vmul.f32 %v600, %v600
            %v604 = vsub.f32 %v602, %v603
            %v605 = vmax.f32 %v604, 0.0
            %v606 = vadd.f32 %v605, 1e-05
            %v607 = vrsqrt.pop %v606
            %v608 = vmul.f32 %v597, %v607
            %609 = vst [vmem:[#allocation2] sm:$0x1] %v608
            %v610 = vmul.f32 %v600, %v608
            %v611 = vsub.f32 %v598, %v610
            %612 = vst [vmem:[#allocation3] sm:$0x1] %v611
          $region80: #{_lambda_.1} parent=71 // pred_fallthru
            _
        $region72: #{_lambda_.1} parent=63 // pred_fallthru
          _
        %p613 = scmp.eq.s32.totalorder %s27, 1
        // Predicated region
        $region81: #{_lambda_.1} parent=63 // pred_check
          %p614 = pneg %p613
        $region82: #{_lambda_.1} parent=63 // pred_check_branch
          %616 = sbr.rel (%p614) target = $region84
        $region83: #{_lambda_.1} parent=63 // pred_region
          %v617 = vld [vmem:[%s1] sm:$0xf]
          %v618 = vld [vmem:[%s1 + $0x4] sm:$0xf]
          %v619 = vld [vmem:[%s1 + $0x8] sm:$0xf]
          %v620 = vld [vmem:[%s1 + $0xc] sm:$0xf]
          %v621 = vld [vmem:[%s1 + $0x10] sm:$0xf]
          %v622 = vld [vmem:[%s1 + $0x14] sm:$0xf]
          %v623 = vld [vmem:[%s1 + $0x18] sm:$0xf]
          %v624 = vld [vmem:[%s1 + $0x1c] sm:$0xf]
          %v625 = vld [vmem:[%s1 + $0x20] sm:$0xf]
          %v626 = vld [vmem:[%s1 + $0x24] sm:$0xf]
          %v627 = vld [vmem:[%s1 + $0x28] sm:$0xf]
          %v628 = vld [vmem:[%s1 + $0x2c] sm:$0xf]
          %v629 = vld [vmem:[%s1 + $0x30] sm:$0xf]
          %v630 = vld [vmem:[%s1 + $0x34] sm:$0xf]
          %v631 = vld [vmem:[%s1 + $0x38] sm:$0xf]
          %v632 = vld [vmem:[%s1 + $0x3c] sm:$0xf]
          %v633 = vpack.c.bf16 %v419, %v418
          %v634 = vpack.c.bf16 %v421, %v420
          %v635 = vpack.c.bf16 %v422, %v422
          %v636 = vld [vmem:[%s2] sm:$0x1]
          %v638 = vlaneseq
          %v639 = vshrl.u32 %v638, 7
          %v640 = vsub.s32 0, %v639
          %v641 = vrot.slane %v636, %v640
          %v659 = vunpack.c.l.b16 %v617
          %v660 = vunpack.c.l.b16 %v618
          %v661 = vunpack.c.l.b16 %v619
          %v662 = vunpack.c.l.b16 %v620
          %v663 = vunpack.c.l.b16 %v621
          %v664 = vunpack.c.l.b16 %v622
          %v665 = vunpack.c.l.b16 %v623
          %v666 = vunpack.c.l.b16 %v624
          %v667 = vunpack.c.l.b16 %v625
          %v668 = vunpack.c.l.b16 %v626
          %v669 = vunpack.c.l.b16 %v627
          %v670 = vunpack.c.l.b16 %v628
          %v671 = vunpack.c.l.b16 %v629
          %v672 = vunpack.c.l.b16 %v630
          %v673 = vunpack.c.l.b16 %v631
          %v674 = vunpack.c.l.b16 %v632
          %v675 = vpack.c.b16 %v660, %v659
          %v676 = vpack.c.b16 %v662, %v661
          %v677 = vpack.c.b16 %v664, %v663
          %v678 = vpack.c.b16 %v666, %v665
          %v679 = vpack.c.b16 %v668, %v667
          %v680 = vpack.c.b16 %v670, %v669
          %v681 = vpack.c.b16 %v672, %v671
          %v682 = vpack.c.b16 %v674, %v673
          %691 = vmatprep.subr.bf16.mxu0 0
          %692 = vmatpush1.bf16.msra.mxu0 %v675
          %693 = vmatprep.subr.bf16.mxu0 0
          %694 = vmatpush1.bf16.msra.mxu0 %v676
          %695 = vmatprep.subr.bf16.mxu0 0
          %696 = vmatpush1.bf16.msra.mxu0 %v677
          %697 = vmatprep.subr.bf16.mxu0 0
          %698 = vmatpush1.bf16.msra.mxu0 %v678
          %699 = vmatprep.subr.bf16.mxu0 0
          %700 = vmatpush1.bf16.msra.mxu0 %v679
          %701 = vmatprep.subr.bf16.mxu0 0
          %702 = vmatpush1.bf16.msra.mxu0 %v680
          %703 = vmatprep.subr.bf16.mxu0 0
          %704 = vmatpush1.bf16.msra.mxu0 %v681
          %705 = vmatprep.subr.bf16.mxu0 0
          %706 = vmatpush1.bf16.msra.mxu0 %v682
          %707 = vmatprep.subr.bf16.mxu0 0
          %708 = vmatpush1.bf16.msra.mxu0 0
          %709 = vmatprep.subr.bf16.mxu0 0
          %710 = vmatpush1.bf16.msra.mxu0 0
          %711 = vmatprep.subr.bf16.mxu0 0
          %712 = vmatpush1.bf16.msra.mxu0 0
          %713 = vmatprep.subr.bf16.mxu0 0
          %714 = vmatpush1.bf16.msra.mxu0 0
          %715 = vmatprep.subr.bf16.mxu0 0
          %716 = vmatpush1.bf16.msra.mxu0 0
          %717 = vmatprep.subr.bf16.mxu0 0
          %718 = vmatpush1.bf16.msra.mxu0 0
          %719 = vmatprep.subr.bf16.mxu0 0
          %720 = vmatpush1.bf16.msra.mxu0 0
          %721 = vmatprep.subr.bf16.mxu0 0
          %722 = vmatpush1.bf16.msra.mxu0 0
          %723 = vmatprep.mubr.bf16.mxu0 0
          %724 = vmatmul.mubr.bf16.gmra.mrb[0].mxu0 %v633
          %v725 = vpop.f32.mrb[0].mxu0
          %v726 = vadd.f32 %v641, %v725
          %v727 = vpop.f32.mrb[0].mxu0
          %v728 = vpop.f32.mrb[0].mxu0
          %v729 = vadd.f32 %v641, %v728
          %v730 = vpop.f32.mrb[0].mxu0
          %731 = vmatprep.mubr.bf16.mxu0 0
          %732 = vmatmul.mubr.bf16.gmra.mrb[0].mxu0 %v634
          %v733 = vpop.f32.mrb[0].mxu0
          %v734 = vadd.f32 %v641, %v733
          %v735 = vpop.f32.mrb[0].mxu0
          %v736 = vpop.f32.mrb[0].mxu0
          %v737 = vadd.f32 %v641, %v736
          %v738 = vpop.f32.mrb[0].mxu0
          %739 = vmatprep.mubr.bf16.mxu0 0
          %740 = vmatmul.mubr.bf16.gmra.mrb[0].mxu0 %v635
          %v741 = vpop.f32.mrb[0].mxu0
          %v742 = vadd.f32 %v641, %v741
          %v743 = vpop.f32.mrb[0].mxu0
          %v744 = vpop.f32.mrb[0].mxu0
          %v745 = vpop.f32.mrb[0].mxu0
          %746 = vdwg.mxu0
          %v747 = vld [vmem:[#allocation2] sm:$0x1]
          %v749 = vlaneseq
          %v750 = vshrl.u32 %v749, 7
          %v751 = vsub.s32 0, %v750
          %v752 = vrot.slane %v747, %v751
          %v754 = vmul.f32 %v726, %v752
          %v755 = vmul.f32 %v729, %v752
          %v756 = vmul.f32 %v734, %v752
          %v757 = vmul.f32 %v737, %v752
          %v758 = vmul.f32 %v742, %v752
          %v759 = vld [vmem:[#allocation3] sm:$0x1]
          %v761 = vlaneseq
          %v762 = vshrl.u32 %v761, 7
          %v763 = vsub.s32 0, %v762
          %v764 = vrot.slane %v759, %v763
          %v766 = vadd.f32 %v754, %v764
          %v767 = vadd.f32 %v755, %v764
          %v768 = vadd.f32 %v756, %v764
          %v769 = vadd.f32 %v757, %v764
          %v770 = vadd.f32 %v758, %v764
          %vm771 = vcmp.gt.f32.partialorder %v766, 20.0
          %vm772 = vcmp.gt.f32.partialorder %v767, 20.0
          %vm773 = vcmp.gt.f32.partialorder %v768, 20.0
          %vm774 = vcmp.gt.f32.partialorder %v769, 20.0
          %vm775 = vcmp.gt.f32.partialorder %v770, 20.0
          %v776 = vmin.f32 %v766, 20.0
          %v777 = vmin.f32 %v767, 20.0
          %v778 = vmin.f32 %v768, 20.0
          %v779 = vmin.f32 %v769, 20.0
          %v780 = vmin.f32 %v770, 20.0
          %v781 = vmul.f32 %v776, 1.442695
          %v782 = vpow.pop %v781
          %v783 = vmul.f32 %v777, 1.442695
          %v784 = vpow.pop %v783
          %v785 = vmul.f32 %v778, 1.442695
          %v786 = vpow.pop %v785
          %v787 = vmul.f32 %v779, 1.442695
          %v788 = vpow.pop %v787
          %v789 = vmul.f32 %v780, 1.442695
          %v790 = vpow.pop %v789
          %v791 = vadd.f32 %v782, 1.0
          %v792 = vlog2.pop %v791
          %v793 = vmul.f32 %v792, 0.6931472
          %v794 = vmul.f32 -0.5, %v782
          %v795 = vadd.f32 %v794, 1.0
          %v796 = vmul.f32 %v795, %v782
          %v797 = vand.u32 2147483647, %v782
          %vm798 = vcmp.lt.f32.partialorder %v797, 0.0004427343
          %v799 = vsel %vm798, %v796, %v793
          %v800 = vadd.f32 %v784, 1.0
          %v801 = vlog2.pop %v800
          %v802 = vmul.f32 %v801, 0.6931472
          %v803 = vmul.f32 -0.5, %v784
          %v804 = vadd.f32 %v803, 1.0
          %v805 = vmul.f32 %v804, %v784
          %v806 = vand.u32 2147483647, %v784
          %vm807 = vcmp.lt.f32.partialorder %v806, 0.0004427343
          %v808 = vsel %vm807, %v805, %v802
          %v809 = vadd.f32 %v786, 1.0
          %v810 = vlog2.pop %v809
          %v811 = vmul.f32 %v810, 0.6931472
          %v812 = vmul.f32 -0.5, %v786
          %v813 = vadd.f32 %v812, 1.0
          %v814 = vmul.f32 %v813, %v786
          %v815 = vand.u32 2147483647, %v786
          %vm816 = vcmp.lt.f32.partialorder %v815, 0.0004427343
          %v817 = vsel %vm816, %v814, %v811
          %v818 = vadd.f32 %v788, 1.0
          %v819 = vlog2.pop %v818
          %v820 = vmul.f32 %v819, 0.6931472
          %v821 = vmul.f32 -0.5, %v788
          %v822 = vadd.f32 %v821, 1.0
          %v823 = vmul.f32 %v822, %v788
          %v824 = vand.u32 2147483647, %v788
          %vm825 = vcmp.lt.f32.partialorder %v824, 0.0004427343
          %v826 = vsel %vm825, %v823, %v820
          %v827 = vadd.f32 %v790, 1.0
          %v828 = vlog2.pop %v827
          %v829 = vmul.f32 %v828, 0.6931472
          %v830 = vmul.f32 -0.5, %v790
          %v831 = vadd.f32 %v830, 1.0
          %v832 = vmul.f32 %v831, %v790
          %v833 = vand.u32 2147483647, %v790
          %vm834 = vcmp.lt.f32.partialorder %v833, 0.0004427343
          %v835 = vsel %vm834, %v832, %v829
          %v836 = vsel %vm771, %v766, %v799
          %v837 = vsel %vm772, %v767, %v808
          %v838 = vsel %vm773, %v768, %v817
          %v839 = vsel %vm774, %v769, %v826
          %v840 = vsel %vm775, %v770, %v835
          %v841 = vld [vmem:[%s5] sm:$0xf]
          %v842 = vld [vmem:[%s5 + $0x4] sm:$0xf]
          %v843 = vld [vmem:[%s5 + $0x8] sm:$0xf]
          %v844 = vld [vmem:[%s5 + $0xc] sm:$0xf]
          %v845 = vld [vmem:[%s5 + $0x10] sm:$0xf]
          %v846 = vld [vmem:[%s5 + $0x14] sm:$0xf]
          %v847 = vld [vmem:[%s5 + $0x18] sm:$0xf]
          %v848 = vld [vmem:[%s5 + $0x1c] sm:$0xf]
          %v849 = vld [vmem:[%s5 + $0x20] sm:$0xf]
          %v850 = vld [vmem:[%s5 + $0x24] sm:$0xf]
          %v851 = vld [vmem:[%s5 + $0x28] sm:$0xf]
          %v852 = vld [vmem:[%s5 + $0x2c] sm:$0xf]
          %v853 = vld [vmem:[%s5 + $0x30] sm:$0xf]
          %v854 = vld [vmem:[%s5 + $0x34] sm:$0xf]
          %v855 = vld [vmem:[%s5 + $0x38] sm:$0xf]
          %v856 = vld [vmem:[%s5 + $0x3c] sm:$0xf]
          %v857 = vpack.c.bf16 %v837, %v836
          %v858 = vpack.c.bf16 %v839, %v838
          %v859 = vpack.c.bf16 %v840, %v840
          %v860 = vld [vmem:[%s6] sm:$0x1]
          %v862 = vlaneseq
          %v863 = vshrl.u32 %v862, 7
          %v864 = vsub.s32 0, %v863
          %v865 = vrot.slane %v860, %v864
          %v883 = vunpack.c.l.b16 %v841
          %v884 = vunpack.c.l.b16 %v842
          %v885 = vunpack.c.l.b16 %v843
          %v886 = vunpack.c.l.b16 %v844
          %v887 = vunpack.c.l.b16 %v845
          %v888 = vunpack.c.l.b16 %v846
          %v889 = vunpack.c.l.b16 %v847
          %v890 = vunpack.c.l.b16 %v848
          %v891 = vunpack.c.l.b16 %v849
          %v892 = vunpack.c.l.b16 %v850
          %v893 = vunpack.c.l.b16 %v851
          %v894 = vunpack.c.l.b16 %v852
          %v895 = vunpack.c.l.b16 %v853
          %v896 = vunpack.c.l.b16 %v854
          %v897 = vunpack.c.l.b16 %v855
          %v898 = vunpack.c.l.b16 %v856
          %v899 = vpack.c.b16 %v884, %v883
          %v900 = vpack.c.b16 %v886, %v885
          %v901 = vpack.c.b16 %v888, %v887
          %v902 = vpack.c.b16 %v890, %v889
          %v903 = vpack.c.b16 %v892, %v891
          %v904 = vpack.c.b16 %v894, %v893
          %v905 = vpack.c.b16 %v896, %v895
          %v906 = vpack.c.b16 %v898, %v897
          %915 = vmatprep.subr.bf16.mxu0 0
          %916 = vmatpush1.bf16.msra.mxu0 %v899
          %917 = vmatprep.subr.bf16.mxu0 0
          %918 = vmatpush1.bf16.msra.mxu0 %v900
          %919 = vmatprep.subr.bf16.mxu0 0
          %920 = vmatpush1.bf16.msra.mxu0 %v901
          %921 = vmatprep.subr.bf16.mxu0 0
          %922 = vmatpush1.bf16.msra.mxu0 %v902
          %923 = vmatprep.subr.bf16.mxu0 0
          %924 = vmatpush1.bf16.msra.mxu0 %v903
          %925 = vmatprep.subr.bf16.mxu0 0
          %926 = vmatpush1.bf16.msra.mxu0 %v904
          %927 = vmatprep.subr.bf16.mxu0 0
          %928 = vmatpush1.bf16.msra.mxu0 %v905
          %929 = vmatprep.subr.bf16.mxu0 0
          %930 = vmatpush1.bf16.msra.mxu0 %v906
          %931 = vmatprep.subr.bf16.mxu0 0
          %932 = vmatpush1.bf16.msra.mxu0 0
          %933 = vmatprep.subr.bf16.mxu0 0
          %934 = vmatpush1.bf16.msra.mxu0 0
          %935 = vmatprep.subr.bf16.mxu0 0
          %936 = vmatpush1.bf16.msra.mxu0 0
          %937 = vmatprep.subr.bf16.mxu0 0
          %938 = vmatpush1.bf16.msra.mxu0 0
          %939 = vmatprep.subr.bf16.mxu0 0
          %940 = vmatpush1.bf16.msra.mxu0 0
          %941 = vmatprep.subr.bf16.mxu0 0
          %942 = vmatpush1.bf16.msra.mxu0 0
          %943 = vmatprep.subr.bf16.mxu0 0
          %944 = vmatpush1.bf16.msra.mxu0 0
          %945 = vmatprep.subr.bf16.mxu0 0
          %946 = vmatpush1.bf16.msra.mxu0 0
          %947 = vmatprep.mubr.bf16.mxu0 0
          %948 = vmatmul.mubr.bf16.gmra.mrb[0].mxu0 %v857
          %v949 = vpop.f32.mrb[0].mxu0
          %v950 = vadd.f32 %v865, %v949
          %v951 = vpop.f32.mrb[0].mxu0
          %v952 = vpop.f32.mrb[0].mxu0
          %v953 = vadd.f32 %v865, %v952
          %v954 = vpop.f32.mrb[0].mxu0
          %955 = vmatprep.mubr.bf16.mxu0 0
          %956 = vmatmul.mubr.bf16.gmra.mrb[0].mxu0 %v858
          %v957 = vpop.f32.mrb[0].mxu0
          %v958 = vadd.f32 %v865, %v957
          %v959 = vpop.f32.mrb[0].mxu0
          %v960 = vpop.f32.mrb[0].mxu0
          %v961 = vadd.f32 %v865, %v960
          %v962 = vpop.f32.mrb[0].mxu0
          %963 = vmatprep.mubr.bf16.mxu0 0
          %964 = vmatmul.mubr.bf16.gmra.mrb[0].mxu0 %v859
          %v965 = vpop.f32.mrb[0].mxu0
          %v966 = vadd.f32 %v865, %v965
          %v967 = vpop.f32.mrb[0].mxu0
          %v968 = vpop.f32.mrb[0].mxu0
          %v969 = vpop.f32.mrb[0].mxu0
          %970 = vdwg.mxu0
          %p971 = scmp.eq.s32.totalorder %s28, 0
          // Predicated region
          $region85: #{_lambda_.1} parent=83 // pred_check
            %p972 = pneg %p971
          $region86: #{_lambda_.1} parent=83 // pred_check_branch
            %974 = sbr.rel (%p972) target = $region88
          $region87: #{_lambda_.1} parent=83 // pred_region
            %975 = vst [vmem:[#allocation4] sm:$0x1] 0.0
            %976 = vst [vmem:[#allocation5] sm:$0x1] 0.0
          $region88: #{_lambda_.1} parent=83 // pred_fallthru
            _
          %v977 = vld [vmem:[#allocation4] sm:$0x1]
          %v978 = vadd.f32 %v950, %v953
          %v979 = vadd.f32 %v978, %v958
          %v980 = vadd.f32 %v979, %v961
          %v981 = vadd.f32 %v980, %v966
          %v982 = vrot.slane %v981, 4
          %v983 = vadd.f32 %v981, %v982
          %v984 = vrot.slane %v983, 2
          %v985 = vadd.f32 %v983, %v984
          %v986 = vrot.slane %v985, 1
          %v987 = vadd.f32 %v985, %v986
          %v988 = vadd.f32 %v977, %v987
          %989 = vst [vmem:[#allocation4] sm:$0x1] %v988
          %v990 = vld [vmem:[#allocation5] sm:$0x1]
          %v991 = vmul.f32 %v950, %v950
          %v992 = vmul.f32 %v953, %v953
          %v993 = vmul.f32 %v958, %v958
          %v994 = vmul.f32 %v961, %v961
          %v995 = vmul.f32 %v966, %v966
          %v996 = vadd.f32 %v991, %v992
          %v997 = vadd.f32 %v996, %v993
          %v998 = vadd.f32 %v997, %v994
          %v999 = vadd.f32 %v998, %v995
          %v1000 = vrot.slane %v999, 4
          %v1001 = vadd.f32 %v999, %v1000
          %v1002 = vrot.slane %v1001, 2
          %v1003 = vadd.f32 %v1001, %v1002
          %v1004 = vrot.slane %v1003, 1
          %v1005 = vadd.f32 %v1003, %v1004
          %v1006 = vadd.f32 %v990, %v1005
          %1007 = vst [vmem:[#allocation5] sm:$0x1] %v1006
          // Predicated region
          $region89: #{_lambda_.1} parent=83 // pred_check
            %p1008 = pneg %p971
          $region90: #{_lambda_.1} parent=83 // pred_check_branch
            %1010 = sbr.rel (%p1008) target = $region92
          $region91: #{_lambda_.1} parent=83 // pred_region
            %v1011 = vld [vmem:[%s7] sm:$0x1]
            %v1012 = vld [vmem:[%s8] sm:$0x1]
            %v1013 = vld [vmem:[#allocation4] sm:$0x1]
            %v1014 = vmul.f32 %v1013, 0.025
            %v1015 = vld [vmem:[#allocation5] sm:$0x1]
            %v1016 = vmul.f32 %v1015, 0.025
            %v1017 = vmul.f32 %v1014, %v1014
            %v1018 = vsub.f32 %v1016, %v1017
            %v1019 = vmax.f32 %v1018, 0.0
            %v1020 = vadd.f32 %v1019, 1e-05
            %v1021 = vrsqrt.pop %v1020
            %v1022 = vmul.f32 %v1011, %v1021
            %1023 = vst [vmem:[#allocation4] sm:$0x1] %v1022
            %v1024 = vmul.f32 %v1014, %v1022
            %v1025 = vsub.f32 %v1012, %v1024
            %1026 = vst [vmem:[#allocation5] sm:$0x1] %v1025
          $region92: #{_lambda_.1} parent=83 // pred_fallthru
            _
        $region84: #{_lambda_.1} parent=63 // pred_fallthru
          _
        %p1027 = scmp.eq.s32.totalorder %s27, 2
        // Predicated region
        $region93: #{_lambda_.1} parent=63 // pred_check
          %p1028 = pneg %p1027
        $region94: #{_lambda_.1} parent=63 // pred_check_branch
          %1030 = sbr.rel (%p1028) target = $region96
        $region95: #{_lambda_.1} parent=63 // pred_region
          %v1031 = vld [vmem:[%s1] sm:$0xf]
          %v1032 = vld [vmem:[%s1 + $0x4] sm:$0xf]
          %v1033 = vld [vmem:[%s1 + $0x8] sm:$0xf]
          %v1034 = vld [vmem:[%s1 + $0xc] sm:$0xf]
          %v1035 = vld [vmem:[%s1 + $0x10] sm:$0xf]
          %v1036 = vld [vmem:[%s1 + $0x14] sm:$0xf]
          %v1037 = vld [vmem:[%s1 + $0x18] sm:$0xf]
          %v1038 = vld [vmem:[%s1 + $0x1c] sm:$0xf]
          %v1039 = vld [vmem:[%s1 + $0x20] sm:$0xf]
          %v1040 = vld [vmem:[%s1 + $0x24] sm:$0xf]
          %v1041 = vld [vmem:[%s1 + $0x28] sm:$0xf]
          %v1042 = vld [vmem:[%s1 + $0x2c] sm:$0xf]
          %v1043 = vld [vmem:[%s1 + $0x30] sm:$0xf]
          %v1044 = vld [vmem:[%s1 + $0x34] sm:$0xf]
          %v1045 = vld [vmem:[%s1 + $0x38] sm:$0xf]
          %v1046 = vld [vmem:[%s1 + $0x3c] sm:$0xf]
          %v1047 = vpack.c.bf16 %v419, %v418
          %v1048 = vpack.c.bf16 %v421, %v420
          %v1049 = vpack.c.bf16 %v422, %v422
          %v1050 = vld [vmem:[%s2] sm:$0x1]
          %v1052 = vlaneseq
          %v1053 = vshrl.u32 %v1052, 7
          %v1054 = vsub.s32 0, %v1053
          %v1055 = vrot.slane %v1050, %v1054
          %v1073 = vunpack.c.l.b16 %v1031
          %v1074 = vunpack.c.l.b16 %v1032
          %v1075 = vunpack.c.l.b16 %v1033
          %v1076 = vunpack.c.l.b16 %v1034
          %v1077 = vunpack.c.l.b16 %v1035
          %v1078 = vunpack.c.l.b16 %v1036
          %v1079 = vunpack.c.l.b16 %v1037
          %v1080 = vunpack.c.l.b16 %v1038
          %v1081 = vunpack.c.l.b16 %v1039
          %v1082 = vunpack.c.l.b16 %v1040
          %v1083 = vunpack.c.l.b16 %v1041
          %v1084 = vunpack.c.l.b16 %v1042
          %v1085 = vunpack.c.l.b16 %v1043
          %v1086 = vunpack.c.l.b16 %v1044
          %v1087 = vunpack.c.l.b16 %v1045
          %v1088 = vunpack.c.l.b16 %v1046
          %v1089 = vpack.c.b16 %v1074, %v1073
          %v1090 = vpack.c.b16 %v1076, %v1075
          %v1091 = vpack.c.b16 %v1078, %v1077
          %v1092 = vpack.c.b16 %v1080, %v1079
          %v1093 = vpack.c.b16 %v1082, %v1081
          %v1094 = vpack.c.b16 %v1084, %v1083
          %v1095 = vpack.c.b16 %v1086, %v1085
          %v1096 = vpack.c.b16 %v1088, %v1087
          %1105 = vmatprep.subr.bf16.mxu0 0
          %1106 = vmatpush1.bf16.msra.mxu0 %v1089
          %1107 = vmatprep.subr.bf16.mxu0 0
          %1108 = vmatpush1.bf16.msra.mxu0 %v1090
          %1109 = vmatprep.subr.bf16.mxu0 0
          %1110 = vmatpush1.bf16.msra.mxu0 %v1091
          %1111 = vmatprep.subr.bf16.mxu0 0
          %1112 = vmatpush1.bf16.msra.mxu0 %v1092
          %1113 = vmatprep.subr.bf16.mxu0 0
          %1114 = vmatpush1.bf16.msra.mxu0 %v1093
          %1115 = vmatprep.subr.bf16.mxu0 0
          %1116 = vmatpush1.bf16.msra.mxu0 %v1094
          %1117 = vmatprep.subr.bf16.mxu0 0
          %1118 = vmatpush1.bf16.msra.mxu0 %v1095
          %1119 = vmatprep.subr.bf16.mxu0 0
          %1120 = vmatpush1.bf16.msra.mxu0 %v1096
          %1121 = vmatprep.subr.bf16.mxu0 0
          %1122 = vmatpush1.bf16.msra.mxu0 0
          %1123 = vmatprep.subr.bf16.mxu0 0
          %1124 = vmatpush1.bf16.msra.mxu0 0
          %1125 = vmatprep.subr.bf16.mxu0 0
          %1126 = vmatpush1.bf16.msra.mxu0 0
          %1127 = vmatprep.subr.bf16.mxu0 0
          %1128 = vmatpush1.bf16.msra.mxu0 0
          %1129 = vmatprep.subr.bf16.mxu0 0
          %1130 = vmatpush1.bf16.msra.mxu0 0
          %1131 = vmatprep.subr.bf16.mxu0 0
          %1132 = vmatpush1.bf16.msra.mxu0 0
          %1133 = vmatprep.subr.bf16.mxu0 0
          %1134 = vmatpush1.bf16.msra.mxu0 0
          %1135 = vmatprep.subr.bf16.mxu0 0
          %1136 = vmatpush1.bf16.msra.mxu0 0
          %1137 = vmatprep.mubr.bf16.mxu0 0
          %1138 = vmatmul.mubr.bf16.gmra.mrb[0].mxu0 %v1047
          %v1139 = vpop.f32.mrb[0].mxu0
          %v1140 = vadd.f32 %v1055, %v1139
          %v1141 = vpop.f32.mrb[0].mxu0
          %v1142 = vpop.f32.mrb[0].mxu0
          %v1143 = vadd.f32 %v1055, %v1142
          %v1144 = vpop.f32.mrb[0].mxu0
          %1145 = vmatprep.mubr.bf16.mxu0 0
          %1146 = vmatmul.mubr.bf16.gmra.mrb[0].mxu0 %v1048
          %v1147 = vpop.f32.mrb[0].mxu0
          %v1148 = vadd.f32 %v1055, %v1147
          %v1149 = vpop.f32.mrb[0].mxu0
          %v1150 = vpop.f32.mrb[0].mxu0
          %v1151 = vadd.f32 %v1055, %v1150
          %v1152 = vpop.f32.mrb[0].mxu0
          %1153 = vmatprep.mubr.bf16.mxu0 0
          %1154 = vmatmul.mubr.bf16.gmra.mrb[0].mxu0 %v1049
          %v1155 = vpop.f32.mrb[0].mxu0
          %v1156 = vadd.f32 %v1055, %v1155
          %v1157 = vpop.f32.mrb[0].mxu0
          %v1158 = vpop.f32.mrb[0].mxu0
          %v1159 = vpop.f32.mrb[0].mxu0
          %1160 = vdwg.mxu0
          %v1161 = vld [vmem:[#allocation2] sm:$0x1]
          %v1163 = vlaneseq
          %v1164 = vshrl.u32 %v1163, 7
          %v1165 = vsub.s32 0, %v1164
          %v1166 = vrot.slane %v1161, %v1165
          %v1168 = vmul.f32 %v1140, %v1166
          %v1169 = vmul.f32 %v1143, %v1166
          %v1170 = vmul.f32 %v1148, %v1166
          %v1171 = vmul.f32 %v1151, %v1166
          %v1172 = vmul.f32 %v1156, %v1166
          %v1173 = vld [vmem:[#allocation3] sm:$0x1]
          %v1175 = vlaneseq
          %v1176 = vshrl.u32 %v1175, 7
          %v1177 = vsub.s32 0, %v1176
          %v1178 = vrot.slane %v1173, %v1177
          %v1180 = vadd.f32 %v1168, %v1178
          %v1181 = vadd.f32 %v1169, %v1178
          %v1182 = vadd.f32 %v1170, %v1178
          %v1183 = vadd.f32 %v1171, %v1178
          %v1184 = vadd.f32 %v1172, %v1178
          %vm1185 = vcmp.gt.f32.partialorder %v1180, 20.0
          %vm1186 = vcmp.gt.f32.partialorder %v1181, 20.0
          %vm1187 = vcmp.gt.f32.partialorder %v1182, 20.0
          %vm1188 = vcmp.gt.f32.partialorder %v1183, 20.0
          %vm1189 = vcmp.gt.f32.partialorder %v1184, 20.0
          %v1190 = vmin.f32 %v1180, 20.0
          %v1191 = vmin.f32 %v1181, 20.0
          %v1192 = vmin.f32 %v1182, 20.0
          %v1193 = vmin.f32 %v1183, 20.0
          %v1194 = vmin.f32 %v1184, 20.0
          %v1195 = vmul.f32 %v1190, 1.442695
          %v1196 = vpow.pop %v1195
          %v1197 = vmul.f32 %v1191, 1.442695
          %v1198 = vpow.pop %v1197
          %v1199 = vmul.f32 %v1192, 1.442695
          %v1200 = vpow.pop %v1199
          %v1201 = vmul.f32 %v1193, 1.442695
          %v1202 = vpow.pop %v1201
          %v1203 = vmul.f32 %v1194, 1.442695
          %v1204 = vpow.pop %v1203
          %v1205 = vadd.f32 %v1196, 1.0
          %v1206 = vlog2.pop %v1205
          %v1207 = vmul.f32 %v1206, 0.6931472
          %v1208 = vmul.f32 -0.5, %v1196
          %v1209 = vadd.f32 %v1208, 1.0
          %v1210 = vmul.f32 %v1209, %v1196
          %v1211 = vand.u32 2147483647, %v1196
          %vm1212 = vcmp.lt.f32.partialorder %v1211, 0.0004427343
          %v1213 = vsel %vm1212, %v1210, %v1207
          %v1214 = vadd.f32 %v1198, 1.0
          %v1215 = vlog2.pop %v1214
          %v1216 = vmul.f32 %v1215, 0.6931472
          %v1217 = vmul.f32 -0.5, %v1198
          %v1218 = vadd.f32 %v1217, 1.0
          %v1219 = vmul.f32 %v1218, %v1198
          %v1220 = vand.u32 2147483647, %v1198
          %vm1221 = vcmp.lt.f32.partialorder %v1220, 0.0004427343
          %v1222 = vsel %vm1221, %v1219, %v1216
          %v1223 = vadd.f32 %v1200, 1.0
          %v1224 = vlog2.pop %v1223
          %v1225 = vmul.f32 %v1224, 0.6931472
          %v1226 = vmul.f32 -0.5, %v1200
          %v1227 = vadd.f32 %v1226, 1.0
          %v1228 = vmul.f32 %v1227, %v1200
          %v1229 = vand.u32 2147483647, %v1200
          %vm1230 = vcmp.lt.f32.partialorder %v1229, 0.0004427343
          %v1231 = vsel %vm1230, %v1228, %v1225
          %v1232 = vadd.f32 %v1202, 1.0
          %v1233 = vlog2.pop %v1232
          %v1234 = vmul.f32 %v1233, 0.6931472
          %v1235 = vmul.f32 -0.5, %v1202
          %v1236 = vadd.f32 %v1235, 1.0
          %v1237 = vmul.f32 %v1236, %v1202
          %v1238 = vand.u32 2147483647, %v1202
          %vm1239 = vcmp.lt.f32.partialorder %v1238, 0.0004427343
          %v1240 = vsel %vm1239, %v1237, %v1234
          %v1241 = vadd.f32 %v1204, 1.0
          %v1242 = vlog2.pop %v1241
          %v1243 = vmul.f32 %v1242, 0.6931472
          %v1244 = vmul.f32 -0.5, %v1204
          %v1245 = vadd.f32 %v1244, 1.0
          %v1246 = vmul.f32 %v1245, %v1204
          %v1247 = vand.u32 2147483647, %v1204
          %vm1248 = vcmp.lt.f32.partialorder %v1247, 0.0004427343
          %v1249 = vsel %vm1248, %v1246, %v1243
          %v1250 = vsel %vm1185, %v1180, %v1213
          %v1251 = vsel %vm1186, %v1181, %v1222
          %v1252 = vsel %vm1187, %v1182, %v1231
          %v1253 = vsel %vm1188, %v1183, %v1240
          %v1254 = vsel %vm1189, %v1184, %v1249
          %v1255 = vld [vmem:[%s5] sm:$0xf]
          %v1256 = vld [vmem:[%s5 + $0x4] sm:$0xf]
          %v1257 = vld [vmem:[%s5 + $0x8] sm:$0xf]
          %v1258 = vld [vmem:[%s5 + $0xc] sm:$0xf]
          %v1259 = vld [vmem:[%s5 + $0x10] sm:$0xf]
          %v1260 = vld [vmem:[%s5 + $0x14] sm:$0xf]
          %v1261 = vld [vmem:[%s5 + $0x18] sm:$0xf]
          %v1262 = vld [vmem:[%s5 + $0x1c] sm:$0xf]
          %v1263 = vld [vmem:[%s5 + $0x20] sm:$0xf]
          %v1264 = vld [vmem:[%s5 + $0x24] sm:$0xf]
          %v1265 = vld [vmem:[%s5 + $0x28] sm:$0xf]
          %v1266 = vld [vmem:[%s5 + $0x2c] sm:$0xf]
          %v1267 = vld [vmem:[%s5 + $0x30] sm:$0xf]
          %v1268 = vld [vmem:[%s5 + $0x34] sm:$0xf]
          %v1269 = vld [vmem:[%s5 + $0x38] sm:$0xf]
          %v1270 = vld [vmem:[%s5 + $0x3c] sm:$0xf]
          %v1271 = vpack.c.bf16 %v1251, %v1250
          %v1272 = vpack.c.bf16 %v1253, %v1252
          %v1273 = vpack.c.bf16 %v1254, %v1254
          %v1274 = vld [vmem:[%s6] sm:$0x1]
          %v1276 = vlaneseq
          %v1277 = vshrl.u32 %v1276, 7
          %v1278 = vsub.s32 0, %v1277
          %v1279 = vrot.slane %v1274, %v1278
          %v1297 = vunpack.c.l.b16 %v1255
          %v1298 = vunpack.c.l.b16 %v1256
          %v1299 = vunpack.c.l.b16 %v1257
          %v1300 = vunpack.c.l.b16 %v1258
          %v1301 = vunpack.c.l.b16 %v1259
          %v1302 = vunpack.c.l.b16 %v1260
          %v1303 = vunpack.c.l.b16 %v1261
          %v1304 = vunpack.c.l.b16 %v1262
          %v1305 = vunpack.c.l.b16 %v1263
          %v1306 = vunpack.c.l.b16 %v1264
          %v1307 = vunpack.c.l.b16 %v1265
          %v1308 = vunpack.c.l.b16 %v1266
          %v1309 = vunpack.c.l.b16 %v1267
          %v1310 = vunpack.c.l.b16 %v1268
          %v1311 = vunpack.c.l.b16 %v1269
          %v1312 = vunpack.c.l.b16 %v1270
          %v1313 = vpack.c.b16 %v1298, %v1297
          %v1314 = vpack.c.b16 %v1300, %v1299
          %v1315 = vpack.c.b16 %v1302, %v1301
          %v1316 = vpack.c.b16 %v1304, %v1303
          %v1317 = vpack.c.b16 %v1306, %v1305
          %v1318 = vpack.c.b16 %v1308, %v1307
          %v1319 = vpack.c.b16 %v1310, %v1309
          %v1320 = vpack.c.b16 %v1312, %v1311
          %1329 = vmatprep.subr.bf16.mxu0 0
          %1330 = vmatpush1.bf16.msra.mxu0 %v1313
          %1331 = vmatprep.subr.bf16.mxu0 0
          %1332 = vmatpush1.bf16.msra.mxu0 %v1314
          %1333 = vmatprep.subr.bf16.mxu0 0
          %1334 = vmatpush1.bf16.msra.mxu0 %v1315
          %1335 = vmatprep.subr.bf16.mxu0 0
          %1336 = vmatpush1.bf16.msra.mxu0 %v1316
          %1337 = vmatprep.subr.bf16.mxu0 0
          %1338 = vmatpush1.bf16.msra.mxu0 %v1317
          %1339 = vmatprep.subr.bf16.mxu0 0
          %1340 = vmatpush1.bf16.msra.mxu0 %v1318
          %1341 = vmatprep.subr.bf16.mxu0 0
          %1342 = vmatpush1.bf16.msra.mxu0 %v1319
          %1343 = vmatprep.subr.bf16.mxu0 0
          %1344 = vmatpush1.bf16.msra.mxu0 %v1320
          %1345 = vmatprep.subr.bf16.mxu0 0
          %1346 = vmatpush1.bf16.msra.mxu0 0
          %1347 = vmatprep.subr.bf16.mxu0 0
          %1348 = vmatpush1.bf16.msra.mxu0 0
          %1349 = vmatprep.subr.bf16.mxu0 0
          %1350 = vmatpush1.bf16.msra.mxu0 0
          %1351 = vmatprep.subr.bf16.mxu0 0
          %1352 = vmatpush1.bf16.msra.mxu0 0
          %1353 = vmatprep.subr.bf16.mxu0 0
          %1354 = vmatpush1.bf16.msra.mxu0 0
          %1355 = vmatprep.subr.bf16.mxu0 0
          %1356 = vmatpush1.bf16.msra.mxu0 0
          %1357 = vmatprep.subr.bf16.mxu0 0
          %1358 = vmatpush1.bf16.msra.mxu0 0
          %1359 = vmatprep.subr.bf16.mxu0 0
          %1360 = vmatpush1.bf16.msra.mxu0 0
          %1361 = vmatprep.mubr.bf16.mxu0 0
          %1362 = vmatmul.mubr.bf16.gmra.mrb[0].mxu0 %v1271
          %v1363 = vpop.f32.mrb[0].mxu0
          %v1364 = vadd.f32 %v1279, %v1363
          %v1365 = vpop.f32.mrb[0].mxu0
          %v1366 = vpop.f32.mrb[0].mxu0
          %v1367 = vadd.f32 %v1279, %v1366
          %v1368 = vpop.f32.mrb[0].mxu0
          %1369 = vmatprep.mubr.bf16.mxu0 0
          %1370 = vmatmul.mubr.bf16.gmra.mrb[0].mxu0 %v1272
          %v1371 = vpop.f32.mrb[0].mxu0
          %v1372 = vadd.f32 %v1279, %v1371
          %v1373 = vpop.f32.mrb[0].mxu0
          %v1374 = vpop.f32.mrb[0].mxu0
          %v1375 = vadd.f32 %v1279, %v1374
          %v1376 = vpop.f32.mrb[0].mxu0
          %1377 = vmatprep.mubr.bf16.mxu0 0
          %1378 = vmatmul.mubr.bf16.gmra.mrb[0].mxu0 %v1273
          %v1379 = vpop.f32.mrb[0].mxu0
          %v1380 = vadd.f32 %v1279, %v1379
          %v1381 = vpop.f32.mrb[0].mxu0
          %v1382 = vpop.f32.mrb[0].mxu0
          %v1383 = vpop.f32.mrb[0].mxu0
          %1384 = vdwg.mxu0
          %v1385 = vld [vmem:[#allocation4] sm:$0x1]
          %v1387 = vlaneseq
          %v1388 = vshrl.u32 %v1387, 7
          %v1389 = vsub.s32 0, %v1388
          %v1390 = vrot.slane %v1385, %v1389
          %v1392 = vmul.f32 %v1364, %v1390
          %v1393 = vmul.f32 %v1367, %v1390
          %v1394 = vmul.f32 %v1372, %v1390
          %v1395 = vmul.f32 %v1375, %v1390
          %v1396 = vmul.f32 %v1380, %v1390
          %v1397 = vld [vmem:[#allocation5] sm:$0x1]
          %v1399 = vlaneseq
          %v1400 = vshrl.u32 %v1399, 7
          %v1401 = vsub.s32 0, %v1400
          %v1402 = vrot.slane %v1397, %v1401
          %v1404 = vadd.f32 %v1392, %v1402
          %v1405 = vadd.f32 %v1393, %v1402
          %v1406 = vadd.f32 %v1394, %v1402
          %v1407 = vadd.f32 %v1395, %v1402
          %v1408 = vadd.f32 %v1396, %v1402
          %vm1409 = vcmp.gt.f32.partialorder %v1404, 20.0
          %vm1410 = vcmp.gt.f32.partialorder %v1405, 20.0
          %vm1411 = vcmp.gt.f32.partialorder %v1406, 20.0
          %vm1412 = vcmp.gt.f32.partialorder %v1407, 20.0
          %vm1413 = vcmp.gt.f32.partialorder %v1408, 20.0
          %v1414 = vmin.f32 %v1404, 20.0
          %v1415 = vmin.f32 %v1405, 20.0
          %v1416 = vmin.f32 %v1406, 20.0
          %v1417 = vmin.f32 %v1407, 20.0
          %v1418 = vmin.f32 %v1408, 20.0
          %v1419 = vmul.f32 %v1414, 1.442695
          %v1420 = vpow.pop %v1419
          %v1421 = vmul.f32 %v1415, 1.442695
          %v1422 = vpow.pop %v1421
          %v1423 = vmul.f32 %v1416, 1.442695
          %v1424 = vpow.pop %v1423
          %v1425 = vmul.f32 %v1417, 1.442695
          %v1426 = vpow.pop %v1425
          %v1427 = vmul.f32 %v1418, 1.442695
          %v1428 = vpow.pop %v1427
          %v1429 = vadd.f32 %v1420, 1.0
          %v1430 = vlog2.pop %v1429
          %v1431 = vmul.f32 %v1430, 0.6931472
          %v1432 = vmul.f32 -0.5, %v1420
          %v1433 = vadd.f32 %v1432, 1.0
          %v1434 = vmul.f32 %v1433, %v1420
          %v1435 = vand.u32 2147483647, %v1420
          %vm1436 = vcmp.lt.f32.partialorder %v1435, 0.0004427343
          %v1437 = vsel %vm1436, %v1434, %v1431
          %v1438 = vadd.f32 %v1422, 1.0
          %v1439 = vlog2.pop %v1438
          %v1440 = vmul.f32 %v1439, 0.6931472
          %v1441 = vmul.f32 -0.5, %v1422
          %v1442 = vadd.f32 %v1441, 1.0
          %v1443 = vmul.f32 %v1442, %v1422
          %v1444 = vand.u32 2147483647, %v1422
          %vm1445 = vcmp.lt.f32.partialorder %v1444, 0.0004427343
          %v1446 = vsel %vm1445, %v1443, %v1440
          %v1447 = vadd.f32 %v1424, 1.0
          %v1448 = vlog2.pop %v1447
          %v1449 = vmul.f32 %v1448, 0.6931472
          %v1450 = vmul.f32 -0.5, %v1424
          %v1451 = vadd.f32 %v1450, 1.0
          %v1452 = vmul.f32 %v1451, %v1424
          %v1453 = vand.u32 2147483647, %v1424
          %vm1454 = vcmp.lt.f32.partialorder %v1453, 0.0004427343
          %v1455 = vsel %vm1454, %v1452, %v1449
          %v1456 = vadd.f32 %v1426, 1.0
          %v1457 = vlog2.pop %v1456
          %v1458 = vmul.f32 %v1457, 0.6931472
          %v1459 = vmul.f32 -0.5, %v1426
          %v1460 = vadd.f32 %v1459, 1.0
          %v1461 = vmul.f32 %v1460, %v1426
          %v1462 = vand.u32 2147483647, %v1426
          %vm1463 = vcmp.lt.f32.partialorder %v1462, 0.0004427343
          %v1464 = vsel %vm1463, %v1461, %v1458
          %v1465 = vadd.f32 %v1428, 1.0
          %v1466 = vlog2.pop %v1465
          %v1467 = vmul.f32 %v1466, 0.6931472
          %v1468 = vmul.f32 -0.5, %v1428
          %v1469 = vadd.f32 %v1468, 1.0
          %v1470 = vmul.f32 %v1469, %v1428
          %v1471 = vand.u32 2147483647, %v1428
          %vm1472 = vcmp.lt.f32.partialorder %v1471, 0.0004427343
          %v1473 = vsel %vm1472, %v1470, %v1467
          %v1474 = vsel %vm1409, %v1404, %v1437
          %v1475 = vsel %vm1410, %v1405, %v1446
          %v1476 = vsel %vm1411, %v1406, %v1455
          %v1477 = vsel %vm1412, %v1407, %v1464
          %v1478 = vsel %vm1413, %v1408, %v1473
          %v1479 = vld [vmem:[#allocation6] sm:$0xf]
          %v1480 = vld [vmem:[#allocation6 + $0x4] sm:$0xf]
          %v1481 = vld [vmem:[#allocation6 + $0x8] sm:$0xf]
          %v1482 = vld [vmem:[#allocation6 + $0xc] sm:$0xf]
          %v1483 = vld [vmem:[#allocation6 + $0x10] sm:$0xf]
          %v1484 = vld [vmem:[#allocation6 + $0x14] sm:$0xf]
          %v1485 = vld [vmem:[#allocation6 + $0x18] sm:$0xf]
          %v1486 = vld [vmem:[#allocation6 + $0x1c] sm:$0xf]
          %v1487 = vld [vmem:[#allocation6 + $0x20] sm:$0xf]
          %v1488 = vld [vmem:[#allocation6 + $0x24] sm:$0xf]
          %v1489 = vld [vmem:[#allocation6 + $0x28] sm:$0xf]
          %v1490 = vld [vmem:[#allocation6 + $0x2c] sm:$0xf]
          %v1491 = vld [vmem:[#allocation6 + $0x30] sm:$0xf]
          %v1492 = vld [vmem:[#allocation6 + $0x34] sm:$0xf]
          %v1493 = vld [vmem:[#allocation6 + $0x38] sm:$0xf]
          %v1494 = vld [vmem:[#allocation6 + $0x3c] sm:$0xf]
          %v1495 = vpack.c.bf16 %v1475, %v1474
          %v1496 = vpack.c.bf16 %v1477, %v1476
          %v1497 = vpack.c.bf16 %v1478, %v1478
          %v1498 = vld [vmem:[%s10] sm:$0x1]
          %v1500 = vlaneseq
          %v1501 = vshrl.u32 %v1500, 7
          %v1502 = vsub.s32 0, %v1501
          %v1503 = vrot.slane %v1498, %v1502
          %v1521 = vunpack.c.l.b16 %v1479
          %v1522 = vunpack.c.l.b16 %v1480
          %v1523 = vunpack.c.l.b16 %v1481
          %v1524 = vunpack.c.l.b16 %v1482
          %v1525 = vunpack.c.l.b16 %v1483
          %v1526 = vunpack.c.l.b16 %v1484
          %v1527 = vunpack.c.l.b16 %v1485
          %v1528 = vunpack.c.l.b16 %v1486
          %v1529 = vunpack.c.l.b16 %v1487
          %v1530 = vunpack.c.l.b16 %v1488
          %v1531 = vunpack.c.l.b16 %v1489
          %v1532 = vunpack.c.l.b16 %v1490
          %v1533 = vunpack.c.l.b16 %v1491
          %v1534 = vunpack.c.l.b16 %v1492
          %v1535 = vunpack.c.l.b16 %v1493
          %v1536 = vunpack.c.l.b16 %v1494
          %v1537 = vpack.c.b16 %v1522, %v1521
          %v1538 = vpack.c.b16 %v1524, %v1523
          %v1539 = vpack.c.b16 %v1526, %v1525
          %v1540 = vpack.c.b16 %v1528, %v1527
          %v1541 = vpack.c.b16 %v1530, %v1529
          %v1542 = vpack.c.b16 %v1532, %v1531
          %v1543 = vpack.c.b16 %v1534, %v1533
          %v1544 = vpack.c.b16 %v1536, %v1535
          %1553 = vmatprep.subr.bf16.mxu0 0
          %1554 = vmatpush1.bf16.msra.mxu0 %v1537
          %1555 = vmatprep.subr.bf16.mxu0 0
          %1556 = vmatpush1.bf16.msra.mxu0 %v1538
          %1557 = vmatprep.subr.bf16.mxu0 0
          %1558 = vmatpush1.bf16.msra.mxu0 %v1539
          %1559 = vmatprep.subr.bf16.mxu0 0
          %1560 = vmatpush1.bf16.msra.mxu0 %v1540
          %1561 = vmatprep.subr.bf16.mxu0 0
          %1562 = vmatpush1.bf16.msra.mxu0 %v1541
          %1563 = vmatprep.subr.bf16.mxu0 0
          %1564 = vmatpush1.bf16.msra.mxu0 %v1542
          %1565 = vmatprep.subr.bf16.mxu0 0
          %1566 = vmatpush1.bf16.msra.mxu0 %v1543
          %1567 = vmatprep.subr.bf16.mxu0 0
          %1568 = vmatpush1.bf16.msra.mxu0 %v1544
          %1569 = vmatprep.subr.bf16.mxu0 0
          %1570 = vmatpush1.bf16.msra.mxu0 0
          %1571 = vmatprep.subr.bf16.mxu0 0
          %1572 = vmatpush1.bf16.msra.mxu0 0
          %1573 = vmatprep.subr.bf16.mxu0 0
          %1574 = vmatpush1.bf16.msra.mxu0 0
          %1575 = vmatprep.subr.bf16.mxu0 0
          %1576 = vmatpush1.bf16.msra.mxu0 0
          %1577 = vmatprep.subr.bf16.mxu0 0
          %1578 = vmatpush1.bf16.msra.mxu0 0
          %1579 = vmatprep.subr.bf16.mxu0 0
          %1580 = vmatpush1.bf16.msra.mxu0 0
          %1581 = vmatprep.subr.bf16.mxu0 0
          %1582 = vmatpush1.bf16.msra.mxu0 0
          %1583 = vmatprep.subr.bf16.mxu0 0
          %1584 = vmatpush1.bf16.msra.mxu0 0
          %1585 = vmatprep.mubr.bf16.mxu0 0
          %1586 = vmatmul.mubr.bf16.gmra.mrb[0].mxu0 %v1495
          %v1587 = vpop.f32.mrb[0].mxu0
          %v1588 = vadd.f32 %v1503, %v1587
          %v1589 = vpop.f32.mrb[0].mxu0
          %v1590 = vpop.f32.mrb[0].mxu0
          %v1591 = vadd.f32 %v1503, %v1590
          %v1592 = vpop.f32.mrb[0].mxu0
          %1593 = vmatprep.mubr.bf16.mxu0 0
          %1594 = vmatmul.mubr.bf16.gmra.mrb[0].mxu0 %v1496
          %v1595 = vpop.f32.mrb[0].mxu0
          %v1596 = vadd.f32 %v1503, %v1595
          %v1597 = vpop.f32.mrb[0].mxu0
          %v1598 = vpop.f32.mrb[0].mxu0
          %v1599 = vadd.f32 %v1503, %v1598
          %v1600 = vpop.f32.mrb[0].mxu0
          %1601 = vmatprep.mubr.bf16.mxu0 0
          %1602 = vmatmul.mubr.bf16.gmra.mrb[0].mxu0 %v1497
          %v1603 = vpop.f32.mrb[0].mxu0
          %v1604 = vadd.f32 %v1503, %v1603
          %v1605 = vpop.f32.mrb[0].mxu0
          %v1606 = vpop.f32.mrb[0].mxu0
          %v1607 = vpop.f32.mrb[0].mxu0
          %1608 = vdwg.mxu0
          %1609 = vst [vmem:[%s415] sm:$0xff] %v1588
          %1610 = vst [vmem:[%s415 + $0x8] sm:$0xff] %v1591
          %1611 = vst [vmem:[%s415 + $0x10] sm:$0xff] %v1596
          %1612 = vst [vmem:[%s415 + $0x18] sm:$0xff] %v1599
          %1613 = vst [vmem:[%s415 + $0x20] sm:$0xff] %v1604
        $region96: #{_lambda_.1} parent=63 // pred_fallthru
          _
        %s1614 = smul.u32 5, %s28
        %p1615 = scmp.lt.s32.totalorder %s1614, 4
        %s1616 = scalar_select %p1615, %s1614, 4
        %s1617 = smul.addr %s1616, 8
        %s1618 = scalar_lea.vmem %s11, %s1617
        // Predicated region
        $region97: #{_lambda_.1} parent=63 // pred_check
          %p1619 = pneg %p289
        $region98: #{_lambda_.1} parent=63 // pred_check_branch
          %1621 = sbr.rel (%p1619) target = $region100
        $region99: #{_lambda_.1} parent=63 // pred_region
          %s1622 = smul.u32 5, %s28
        $region100: #{_lambda_.1} parent=63 // pred_fallthru
          _
        // Predicated region
        $region101: #{_lambda_.1} parent=63 // pred_check
          %p1623 = pneg %p289
        $region102: #{_lambda_.1} parent=63 // pred_check_branch
          %1625 = sbr.rel (%p1623) target = $region104
        $region103: #{_lambda_.1} parent=63 // pred_region
          %s1626 = smul.u32 5, %s28
          %p1627 = scmp.lt.s32.totalorder %s1626, 4
          %s1628 = scalar_select %p1627, %s1626, 4
          %s1629 = smul.addr %s1628, 8
          %s1630 = scalar_lea.vmem %s11, %s1629
        $region104: #{_lambda_.1} parent=63 // pred_fallthru
          _
      $region64: #{_lambda_.1} parent=5 // pred_fallthru
        _
      %p1631 = scmp.le.s32.totalorder 2, %s18
      // Predicated region
      $region105: #{_lambda_.1} parent=5 // pred_check
        %p1632 = pneg %p1631
      $region106: #{_lambda_.1} parent=5 // pred_check_branch
        %1634 = sbr.rel (%p1632) target = $region108
      $region107: #{_lambda_.1} parent=5 // pred_region
        %s1635 = ssub.s32 %s18, 2
      $region108: #{_lambda_.1} parent=5 // pred_fallthru
        _
    $region6: #{_lambda_.1} parent=1 // loop_footer
      %s22 = sadd.s32 1, %s18
    $region7: #{_lambda_.1} parent=1 // loop_footer_branch
      %17 = sbr.rel target = $region3
    $region8: #{_lambda_.1} parent=1 // loop_exit
      _
    %1636 = vsyncpa [#allocation7], 1
    %s1637 = scalar_lea.sflag [#allocation7], 1
    %1638 = vsyncpa %s1637, 1

</llo_original>
